<compile_context>
chip_gen: v5e
topology: v5e:2x2
jax: 0.10.0
libtpu: 0.0.40
codegen_flags: <defaults>
</compile_context>

<pallas_src>
import functools

import jax
import jax.numpy as jnp
from jax.experimental import pallas as pl
from jax.experimental.pallas import tpu as pltpu


def _transformer_block_kernel(
    # inputs
    x_ref,       # (1, S, E)  bf16 activations for one batch element
    wqkv_ref,    # (E, 3E)    bf16 fused in-projection (Q columns pre-scaled)
    bqkv_ref,    # (1, 3E)    f32  fused in-projection bias (Q part pre-scaled)
    wo_ref,      # (E, E)     bf16 attention out-projection (pre-transposed)
    bo_ref,      # (1, E)     f32
    w1_ref,      # (E, M)     bf16 MLP up   (pre-transposed)
    b1_ref,      # (1, M)     f32
    w2_ref,      # (M, E)     bf16 MLP down (pre-transposed)
    b2_ref,      # (1, E)     f32
    # outputs
    o_ref,       # (1, TQ, E) f32 output tile
    # scratch (persists across the query-tile grid axis)
    q_sc,        # (H, S, Dh) bf16
    k_sc,        # (H, Dh, S) bf16  (K pre-transposed -> lane-dense along S)
    v_sc,        # (H, S, Dh) bf16
    *,
    num_heads: int,
    q_tile: int,
):
    H, TQ = num_heads, q_tile
    S, E = x_ref.shape[1], x_ref.shape[2]
    Dh = E // H
    qi = pl.program_id(1)

    # ---- Fused QKV projection: once per batch element (query tile 0) -------
    # One lane-dense (S,E)@(E,3E) MXU matmul; the per-head split and the K
    # transpose happen once here, so every query-tile step below uses
    # canonical batched matmuls with no per-step transposes.
    @pl.when(qi == 0)
    def _():
        x_all = x_ref[0]                                             # (S, E) bf16
        qkv = jnp.dot(x_all, wqkv_ref[...],
                      preferred_element_type=jnp.float32) + bqkv_ref[...]  # (S,3E) f32
        for h in range(H):                                           # static loop
            lo = h * Dh
            q_sc[h] = qkv[:, lo:lo + Dh].astype(q_sc.dtype)          # (S, Dh)
            k_sc[h] = jnp.transpose(
                qkv[:, E + lo:E + lo + Dh]).astype(k_sc.dtype)       # (Dh, S)
            v_sc[h] = qkv[:, 2 * E + lo:2 * E + lo + Dh].astype(v_sc.dtype)

    # ---- Attention for this query tile --------------------------------------
    q0 = pl.multiple_of(qi * TQ, TQ)
    q = q_sc[:, pl.ds(q0, TQ), :]                                    # (H, TQ, Dh) bf16

    # scores: per-head (TQ,Dh)@(Dh,S), batched over heads (K already (Dh,S)).
    s = jnp.einsum("htd,hds->hts", q, k_sc[...],
                   preferred_element_type=jnp.float32)               # (H, TQ, S)
    s = s - jnp.max(s, axis=-1, keepdims=True)
    p = jnp.exp(s)
    p = p * pl.reciprocal(jnp.sum(p, axis=-1, keepdims=True), approx=True)

    ctx = jnp.einsum("hts,hsd->htd", p.astype(jnp.bfloat16), v_sc[...],
                     preferred_element_type=jnp.float32)             # (H, TQ, Dh)

    # Heads -> lanes: (H,TQ,Dh) -> (TQ, H*Dh); single E-deep out-proj matmul.
    ctx_flat = jnp.concatenate([ctx[h] for h in range(H)], axis=-1)  # (TQ, E) f32
    attn = jnp.dot(ctx_flat.astype(jnp.bfloat16), wo_ref[...],
                   preferred_element_type=jnp.float32) + bo_ref[...]  # (TQ, E)

    # ---- MLP: Linear -> GELU (exact erf, PyTorch default) -> Linear --------
    # TODO(synk): jax.nn.gelu(approximate=True) would move this to the EUP if
    # the tolerance budget allows; kept exact-erf to match nn.GELU() exactly.
    h1 = jnp.dot(attn.astype(jnp.bfloat16), w1_ref[...],
                 preferred_element_type=jnp.float32) + b1_ref[...]   # (TQ, M)
    h1 = 0.5 * h1 * (1.0 + jax.lax.erf(h1 * 0.7071067811865476))
    y = jnp.dot(h1.astype(jnp.bfloat16), w2_ref[...],
                preferred_element_type=jnp.float32) + b2_ref[...]    # (TQ, E)

    o_ref[0] = y.astype(o_ref.dtype)


def prepare_params(torch_params, *, embed_size, num_heads):
    """Fuse / pre-transpose / scale-fold PyTorch-layout parameters.

    torch_params (f32, PyTorch layouts): in_proj_w (3E,E), in_proj_b (3E,),
    out_proj_w (E,E), out_proj_b (E,), w1 (M,E), b1 (M,), w2 (E,M), b2 (E,).
    """
    E = embed_size
    Dh = E // num_heads
    scale = 1.0 / (Dh ** 0.5)
    f32, bf16 = jnp.float32, jnp.bfloat16

    wi, bi = torch_params["in_proj_w"], torch_params["in_proj_b"]
    # x @ wqkv + bqkv == [q*scale | k | v]  (scale folded into the Q columns).
    col_scale = jnp.concatenate(
        [jnp.full((E,), scale, f32), jnp.ones((2 * E,), f32)])
    wqkv = (wi.T * col_scale[None, :]).astype(bf16)                  # (E, 3E)
    bqkv = (bi * col_scale).reshape(1, 3 * E).astype(f32)

    return {
        "wqkv": wqkv,
        "bqkv": bqkv,
        "wo": torch_params["out_proj_w"].T.astype(bf16),             # (E, E)
        "bo": torch_params["out_proj_b"].reshape(1, E).astype(f32),
        "w1": torch_params["w1"].T.astype(bf16),                     # (E, M)
        "b1": torch_params["b1"].reshape(1, -1).astype(f32),
        "w2": torch_params["w2"].T.astype(bf16),                     # (M, E)
        "b2": torch_params["b2"].reshape(1, E).astype(f32),
    }


def _vmem_budget():
    """Per-generation VMEM limit: ~48 MiB on v7x (64 MiB), ~100 MiB on v5e/v6e."""
    try:
        cap = pltpu.get_tpu_info().vmem_capacity_bytes
    except Exception:
        cap = 64 * 1024 * 1024          # conservative (v7x-sized) fallback
    return int(min(cap - 16 * 1024 * 1024, 100 * 1024 * 1024))


def transformer_block(x_sbe, params, *, embed_size, num_heads, mlp_dim,
                      q_tile=128):
    """x_sbe: (seq, batch, embed) f32, like the PyTorch module input.

    q_tile: 128 is right for v5e/v7x; on v6e pass 256 to fill the 256-wide MXU.
    """
    S, B, E = x_sbe.shape
    M, H = mlp_dim, num_heads
    TQ = min(q_tile, S)
    assert S % TQ == 0, "seq length must be a multiple of the query tile"
    n_q = S // TQ
    vmem_limit = _vmem_budget()

    # Batch-first + bf16 in HBM (numerically identical to the in-kernel cast;
    # halves the per-step activation DMA).
    # TODO(synk): callers that keep batch-first activations can skip the
    # whole-tensor transposes.
    x_bse = jnp.transpose(x_sbe, (1, 0, 2)).astype(jnp.bfloat16)     # (B, S, E)

    kernel = functools.partial(_transformer_block_kernel,
                               num_heads=H, q_tile=TQ)

    def build(single_buffer_weights):
        # Grid-invariant operands: constant block index => never re-fetched;
        # optionally single-buffered so ~14 MB of ViT-scale weights are not
        # duplicated by the default double-buffering.
        if single_buffer_weights:
            def inv(shp):
                return pl.BlockSpec(shp, lambda b, q, _s=shp: (0,) * len(_s),
                                    pipeline_mode=pl.Buffered(buffer_count=1))
        else:
            def inv(shp):
                return pl.BlockSpec(shp, lambda b, q, _s=shp: (0,) * len(_s))

        return pl.pallas_call(
            kernel,
            out_shape=jax.ShapeDtypeStruct((B, S, E), jnp.float32),
            grid_spec=pltpu.PrefetchScalarGridSpec(
                num_scalar_prefetch=0,
                grid=(B, n_q),
                in_specs=[
                    pl.BlockSpec((1, S, E), lambda b, q: (b, 0, 0)),  # x
                    inv((E, 3 * E)),    # wqkv (Q columns pre-scaled)
                    inv((1, 3 * E)),    # bqkv
                    inv((E, E)),        # wo
                    inv((1, E)),        # bo
                    inv((E, M)),        # w1
                    inv((1, M)),        # b1
                    inv((M, E)),        # w2
                    inv((1, E)),        # b2
                ],
                out_specs=pl.BlockSpec((1, TQ, E), lambda b, q: (b, q, 0)),
                scratch_shapes=[
                    pltpu.VMEM((H, S, E // H), jnp.bfloat16),   # Q, per batch
                    pltpu.VMEM((H, E // H, S), jnp.bfloat16),   # K^T, per batch
                    pltpu.VMEM((H, S, E // H), jnp.bfloat16),   # V, per batch
                ],
            ),
            compiler_params=pltpu.CompilerParams(
                dimension_semantics=("parallel", "arbitrary"),
                vmem_limit_bytes=vmem_limit,
            ),
        )

    args = (x_bse,
            params["wqkv"], params["bqkv"],
            params["wo"], params["bo"],
            params["w1"], params["b1"],
            params["w2"], params["b2"])
    try:
        out_bse = build(True)(*args)
    except Exception:
        # pipeline_mode=pl.Buffered(1) support varies by JAX version; fall
        # back to default (double-buffered) weight specs.
        out_bse = build(False)(*args)
    return jnp.transpose(out_bse, (1, 0, 2))                         # (S, B, E)


def init_torch_params(key, embed_size, mlp_dim):
    E, M = embed_size, mlp_dim
    ks = jax.random.split(key, 8)
    s = 0.02
    return {
        "in_proj_w":  s * jax.random.normal(ks[0], (3 * E, E), jnp.float32),
        "in_proj_b":  s * jax.random.normal(ks[1], (3 * E,), jnp.float32),
        "out_proj_w": s * jax.random.normal(ks[2], (E, E), jnp.float32),
        "out_proj_b": s * jax.random.normal(ks[3], (E,), jnp.float32),
        "w1": s * jax.random.normal(ks[4], (M, E), jnp.float32),
        "b1": s * jax.random.normal(ks[5], (M,), jnp.float32),
        "w2": s * jax.random.normal(ks[6], (E, M), jnp.float32),
        "b2": s * jax.random.normal(ks[7], (E,), jnp.float32),
    }


if __name__ == "__main__":
    EMBED, HEADS, MLP, SEQ, BATCH = 32, 4, 64, 8, 2

    key = jax.random.PRNGKey(0)
    kx, kp = jax.random.split(key)
    x = jax.random.normal(kx, (SEQ, BATCH, EMBED), jnp.float32)      # (S, B, E)
    params = prepare_params(init_torch_params(kp, EMBED, MLP),
                            embed_size=EMBED, num_heads=HEADS)

    out = transformer_block(x, params, embed_size=EMBED, num_heads=HEADS,
                            mlp_dim=MLP)
    out = jax.block_until_ready(out)
    assert out.shape == (SEQ, BATCH, EMBED)
    print("KERNEL_OK")
</pallas_src>

<mosaic_0001>
module attributes {stable_mosaic.version = 11 : i64} {
  func.func @_transformer_block_kernel(%arg0: i32, %arg1: i32, %arg2: memref<1x8x32xbf16, #tpu.memory_space<vmem>>, %arg3: memref<32x96xbf16, #tpu.memory_space<vmem>>, %arg4: memref<1x96xf32, #tpu.memory_space<vmem>>, %arg5: memref<32x32xbf16, #tpu.memory_space<vmem>>, %arg6: memref<1x32xf32, #tpu.memory_space<vmem>>, %arg7: memref<32x64xbf16, #tpu.memory_space<vmem>>, %arg8: memref<1x64xf32, #tpu.memory_space<vmem>>, %arg9: memref<64x32xbf16, #tpu.memory_space<vmem>>, %arg10: memref<1x32xf32, #tpu.memory_space<vmem>>, %arg11: memref<1x8x32xf32, #tpu.memory_space<vmem>>, %arg12: memref<4x8x8xbf16, #tpu.memory_space<vmem>>, %arg13: memref<4x8x8xbf16, #tpu.memory_space<vmem>>, %arg14: memref<4x8x8xbf16, #tpu.memory_space<vmem>>) attributes {dimension_semantics = [#tpu.dimension_semantics<parallel>, #tpu.dimension_semantics<arbitrary>], iteration_bounds = array<i64: 2, 1>, scalar_prefetch = 0 : i64, scratch_operands = 3 : i64, tpu.core_type = #tpu.core_type<tc>, window_params = [{transform_indices = @transform_0, window_bounds = array<i64: 1, 8, 32>}, {pipeline_mode = #tpu.pipeline_mode<synchronous>, transform_indices = @transform_1, window_bounds = array<i64: 32, 96>}, {pipeline_mode = #tpu.pipeline_mode<synchronous>, transform_indices = @transform_2, window_bounds = array<i64: 1, 96>}, {pipeline_mode = #tpu.pipeline_mode<synchronous>, transform_indices = @transform_3, window_bounds = array<i64: 32, 32>}, {pipeline_mode = #tpu.pipeline_mode<synchronous>, transform_indices = @transform_4, window_bounds = array<i64: 1, 32>}, {pipeline_mode = #tpu.pipeline_mode<synchronous>, transform_indices = @transform_5, window_bounds = array<i64: 32, 64>}, {pipeline_mode = #tpu.pipeline_mode<synchronous>, transform_indices = @transform_6, window_bounds = array<i64: 1, 64>}, {pipeline_mode = #tpu.pipeline_mode<synchronous>, transform_indices = @transform_7, window_bounds = array<i64: 64, 32>}, {pipeline_mode = #tpu.pipeline_mode<synchronous>, transform_indices = @transform_8, window_bounds = array<i64: 1, 32>}, {transform_indices = @transform_9, window_bounds = array<i64: 1, 8, 32>}]} {
    %c0_i32 = arith.constant 0 : i32
    %0 = arith.cmpi eq, %arg1, %c0_i32 : i32
    %1 = arith.extui %0 : i1 to i32
    %c0_i32_0 = arith.constant 0 : i32
    %2 = arith.cmpi ne, %1, %c0_i32_0 : i32
    scf.if %2 {
      %c0_32 = arith.constant 0 : index
      %c0_33 = arith.constant 0 : index
      %c0_34 = arith.constant 0 : index
      %60 = vector.load %arg2[%c0_32, %c0_33, %c0_34] : memref<1x8x32xbf16, #tpu.memory_space<vmem>>, vector<1x8x32xbf16>
      %61 = vector.shape_cast %60 : vector<1x8x32xbf16> to vector<8x32xbf16>
      %c0_35 = arith.constant 0 : index
      %c0_36 = arith.constant 0 : index
      %62 = vector.load %arg3[%c0_35, %c0_36] : memref<32x96xbf16, #tpu.memory_space<vmem>>, vector<32x96xbf16>
      %cst_37 = arith.constant dense<0.000000e+00> : vector<8x96xf32>
      %63 = tpu.matmul %61, %62, %cst_37 {dimension_numbers = #tpu.dot_dimension_numbers<[1], [0], [0], [1], [0, 0, 1, 1], [], []>} : vector<8x32xbf16>, vector<32x96xbf16>, vector<8x96xf32> -> vector<8x96xf32>
      %c0_38 = arith.constant 0 : index
      %c0_39 = arith.constant 0 : index
      %64 = vector.load %arg4[%c0_38, %c0_39] : memref<1x96xf32, #tpu.memory_space<vmem>>, vector<1x96xf32>
      %65 = vector.broadcast %64 : vector<1x96xf32> to vector<8x96xf32>
      %66 = arith.addf %63, %65 : vector<8x96xf32>
      %67 = vector.extract_strided_slice %66 {offsets = [0, 0], sizes = [8, 8], strides = [1, 1]} : vector<8x96xf32> to vector<8x8xf32>
      %68 = arith.truncf %67 : vector<8x8xf32> to vector<8x8xbf16>
      %c0_40 = arith.constant 0 : index
      %c0_41 = arith.constant 0 : index
      %c0_42 = arith.constant 0 : index
      %69 = vector.load %arg12[%c0_40, %c0_41, %c0_42] : memref<4x8x8xbf16, #tpu.memory_space<vmem>>, vector<1x8x8xbf16>
      %70 = vector.shape_cast %69 : vector<1x8x8xbf16> to vector<8x8xbf16>
      %71 = vector.shape_cast %68 : vector<8x8xbf16> to vector<1x8x8xbf16>
      tpu.vector_store %arg12[%c0_40, %c0_41, %c0_42], %71 {strides = array<i32>} : memref<4x8x8xbf16, #tpu.memory_space<vmem>>, vector<1x8x8xbf16>,
      %72 = vector.extract_strided_slice %66 {offsets = [0, 32], sizes = [8, 8], strides = [1, 1]} : vector<8x96xf32> to vector<8x8xf32>
      %73 = tpu.transpose %72, [1, 0] : vector<8x8xf32> -> vector<8x8xf32>
      %74 = arith.truncf %73 : vector<8x8xf32> to vector<8x8xbf16>
      %c0_43 = arith.constant 0 : index
      %c0_44 = arith.constant 0 : index
      %c0_45 = arith.constant 0 : index
      %75 = vector.load %arg13[%c0_43, %c0_44, %c0_45] : memref<4x8x8xbf16, #tpu.memory_space<vmem>>, vector<1x8x8xbf16>
      %76 = vector.shape_cast %75 : vector<1x8x8xbf16> to vector<8x8xbf16>
      %77 = vector.shape_cast %74 : vector<8x8xbf16> to vector<1x8x8xbf16>
      tpu.vector_store %arg13[%c0_43, %c0_44, %c0_45], %77 {strides = array<i32>} : memref<4x8x8xbf16, #tpu.memory_space<vmem>>, vector<1x8x8xbf16>,
      %78 = vector.extract_strided_slice %66 {offsets = [0, 64], sizes = [8, 8], strides = [1, 1]} : vector<8x96xf32> to vector<8x8xf32>
      %79 = arith.truncf %78 : vector<8x8xf32> to vector<8x8xbf16>
      %c0_46 = arith.constant 0 : index
      %c0_47 = arith.constant 0 : index
      %c0_48 = arith.constant 0 : index
      %80 = vector.load %arg14[%c0_46, %c0_47, %c0_48] : memref<4x8x8xbf16, #tpu.memory_space<vmem>>, vector<1x8x8xbf16>
      %81 = vector.shape_cast %80 : vector<1x8x8xbf16> to vector<8x8xbf16>
      %82 = vector.shape_cast %79 : vector<8x8xbf16> to vector<1x8x8xbf16>
      tpu.vector_store %arg14[%c0_46, %c0_47, %c0_48], %82 {strides = array<i32>} : memref<4x8x8xbf16, #tpu.memory_space<vmem>>, vector<1x8x8xbf16>,
      %83 = vector.extract_strided_slice %66 {offsets = [0, 8], sizes = [8, 8], strides = [1, 1]} : vector<8x96xf32> to vector<8x8xf32>
      %84 = arith.truncf %83 : vector<8x8xf32> to vector<8x8xbf16>
      %c1 = arith.constant 1 : index
      %c0_49 = arith.constant 0 : index
      %c0_50 = arith.constant 0 : index
      %85 = vector.load %arg12[%c1, %c0_49, %c0_50] : memref<4x8x8xbf16, #tpu.memory_space<vmem>>, vector<1x8x8xbf16>
      %86 = vector.shape_cast %85 : vector<1x8x8xbf16> to vector<8x8xbf16>
      %87 = vector.shape_cast %84 : vector<8x8xbf16> to vector<1x8x8xbf16>
      tpu.vector_store %arg12[%c1, %c0_49, %c0_50], %87 {strides = array<i32>} : memref<4x8x8xbf16, #tpu.memory_space<vmem>>, vector<1x8x8xbf16>,
      %88 = vector.extract_strided_slice %66 {offsets = [0, 40], sizes = [8, 8], strides = [1, 1]} : vector<8x96xf32> to vector<8x8xf32>
      %89 = tpu.transpose %88, [1, 0] : vector<8x8xf32> -> vector<8x8xf32>
      %90 = arith.truncf %89 : vector<8x8xf32> to vector<8x8xbf16>
      %c1_51 = arith.constant 1 : index
      %c0_52 = arith.constant 0 : index
      %c0_53 = arith.constant 0 : index
      %91 = vector.load %arg13[%c1_51, %c0_52, %c0_53] : memref<4x8x8xbf16, #tpu.memory_space<vmem>>, vector<1x8x8xbf16>
      %92 = vector.shape_cast %91 : vector<1x8x8xbf16> to vector<8x8xbf16>
      %93 = vector.shape_cast %90 : vector<8x8xbf16> to vector<1x8x8xbf16>
      tpu.vector_store %arg13[%c1_51, %c0_52, %c0_53], %93 {strides = array<i32>} : memref<4x8x8xbf16, #tpu.memory_space<vmem>>, vector<1x8x8xbf16>,
      %94 = vector.extract_strided_slice %66 {offsets = [0, 72], sizes = [8, 8], strides = [1, 1]} : vector<8x96xf32> to vector<8x8xf32>
      %95 = arith.truncf %94 : vector<8x8xf32> to vector<8x8xbf16>
      %c1_54 = arith.constant 1 : index
      %c0_55 = arith.constant 0 : index
      %c0_56 = arith.constant 0 : index
      %96 = vector.load %arg14[%c1_54, %c0_55, %c0_56] : memref<4x8x8xbf16, #tpu.memory_space<vmem>>, vector<1x8x8xbf16>
      %97 = vector.shape_cast %96 : vector<1x8x8xbf16> to vector<8x8xbf16>
      %98 = vector.shape_cast %95 : vector<8x8xbf16> to vector<1x8x8xbf16>
      tpu.vector_store %arg14[%c1_54, %c0_55, %c0_56], %98 {strides = array<i32>} : memref<4x8x8xbf16, #tpu.memory_space<vmem>>, vector<1x8x8xbf16>,
      %99 = vector.extract_strided_slice %66 {offsets = [0, 16], sizes = [8, 8], strides = [1, 1]} : vector<8x96xf32> to vector<8x8xf32>
      %100 = arith.truncf %99 : vector<8x8xf32> to vector<8x8xbf16>
      %c2 = arith.constant 2 : index
      %c0_57 = arith.constant 0 : index
      %c0_58 = arith.constant 0 : index
      %101 = vector.load %arg12[%c2, %c0_57, %c0_58] : memref<4x8x8xbf16, #tpu.memory_space<vmem>>, vector<1x8x8xbf16>
      %102 = vector.shape_cast %101 : vector<1x8x8xbf16> to vector<8x8xbf16>
      %103 = vector.shape_cast %100 : vector<8x8xbf16> to vector<1x8x8xbf16>
      tpu.vector_store %arg12[%c2, %c0_57, %c0_58], %103 {strides = array<i32>} : memref<4x8x8xbf16, #tpu.memory_space<vmem>>, vector<1x8x8xbf16>,
      %104 = vector.extract_strided_slice %66 {offsets = [0, 48], sizes = [8, 8], strides = [1, 1]} : vector<8x96xf32> to vector<8x8xf32>
      %105 = tpu.transpose %104, [1, 0] : vector<8x8xf32> -> vector<8x8xf32>
      %106 = arith.truncf %105 : vector<8x8xf32> to vector<8x8xbf16>
      %c2_59 = arith.constant 2 : index
      %c0_60 = arith.constant 0 : index
      %c0_61 = arith.constant 0 : index
      %107 = vector.load %arg13[%c2_59, %c0_60, %c0_61] : memref<4x8x8xbf16, #tpu.memory_space<vmem>>, vector<1x8x8xbf16>
      %108 = vector.shape_cast %107 : vector<1x8x8xbf16> to vector<8x8xbf16>
      %109 = vector.shape_cast %106 : vector<8x8xbf16> to vector<1x8x8xbf16>
      tpu.vector_store %arg13[%c2_59, %c0_60, %c0_61], %109 {strides = array<i32>} : memref<4x8x8xbf16, #tpu.memory_space<vmem>>, vector<1x8x8xbf16>,
      %110 = vector.extract_strided_slice %66 {offsets = [0, 80], sizes = [8, 8], strides = [1, 1]} : vector<8x96xf32> to vector<8x8xf32>
      %111 = arith.truncf %110 : vector<8x8xf32> to vector<8x8xbf16>
      %c2_62 = arith.constant 2 : index
      %c0_63 = arith.constant 0 : index
      %c0_64 = arith.constant 0 : index
      %112 = vector.load %arg14[%c2_62, %c0_63, %c0_64] : memref<4x8x8xbf16, #tpu.memory_space<vmem>>, vector<1x8x8xbf16>
      %113 = vector.shape_cast %112 : vector<1x8x8xbf16> to vector<8x8xbf16>
      %114 = vector.shape_cast %111 : vector<8x8xbf16> to vector<1x8x8xbf16>
      tpu.vector_store %arg14[%c2_62, %c0_63, %c0_64], %114 {strides = array<i32>} : memref<4x8x8xbf16, #tpu.memory_space<vmem>>, vector<1x8x8xbf16>,
      %115 = vector.extract_strided_slice %66 {offsets = [0, 24], sizes = [8, 8], strides = [1, 1]} : vector<8x96xf32> to vector<8x8xf32>
      %116 = arith.truncf %115 : vector<8x8xf32> to vector<8x8xbf16>
      %c3 = arith.constant 3 : index
      %c0_65 = arith.constant 0 : index
      %c0_66 = arith.constant 0 : index
      %117 = vector.load %arg12[%c3, %c0_65, %c0_66] : memref<4x8x8xbf16, #tpu.memory_space<vmem>>, vector<1x8x8xbf16>
      %118 = vector.shape_cast %117 : vector<1x8x8xbf16> to vector<8x8xbf16>
      %119 = vector.shape_cast %116 : vector<8x8xbf16> to vector<1x8x8xbf16>
      tpu.vector_store %arg12[%c3, %c0_65, %c0_66], %119 {strides = array<i32>} : memref<4x8x8xbf16, #tpu.memory_space<vmem>>, vector<1x8x8xbf16>,
      %120 = vector.extract_strided_slice %66 {offsets = [0, 56], sizes = [8, 8], strides = [1, 1]} : vector<8x96xf32> to vector<8x8xf32>
      %121 = tpu.transpose %120, [1, 0] : vector<8x8xf32> -> vector<8x8xf32>
      %122 = arith.truncf %121 : vector<8x8xf32> to vector<8x8xbf16>
      %c3_67 = arith.constant 3 : index
      %c0_68 = arith.constant 0 : index
      %c0_69 = arith.constant 0 : index
      %123 = vector.load %arg13[%c3_67, %c0_68, %c0_69] : memref<4x8x8xbf16, #tpu.memory_space<vmem>>, vector<1x8x8xbf16>
      %124 = vector.shape_cast %123 : vector<1x8x8xbf16> to vector<8x8xbf16>
      %125 = vector.shape_cast %122 : vector<8x8xbf16> to vector<1x8x8xbf16>
      tpu.vector_store %arg13[%c3_67, %c0_68, %c0_69], %125 {strides = array<i32>} : memref<4x8x8xbf16, #tpu.memory_space<vmem>>, vector<1x8x8xbf16>,
      %126 = vector.extract_strided_slice %66 {offsets = [0, 88], sizes = [8, 8], strides = [1, 1]} : vector<8x96xf32> to vector<8x8xf32>
      %127 = arith.truncf %126 : vector<8x8xf32> to vector<8x8xbf16>
      %c3_70 = arith.constant 3 : index
      %c0_71 = arith.constant 0 : index
      %c0_72 = arith.constant 0 : index
      %128 = vector.load %arg14[%c3_70, %c0_71, %c0_72] : memref<4x8x8xbf16, #tpu.memory_space<vmem>>, vector<1x8x8xbf16>
      %129 = vector.shape_cast %128 : vector<1x8x8xbf16> to vector<8x8xbf16>
      %130 = vector.shape_cast %127 : vector<8x8xbf16> to vector<1x8x8xbf16>
      tpu.vector_store %arg14[%c3_70, %c0_71, %c0_72], %130 {strides = array<i32>} : memref<4x8x8xbf16, #tpu.memory_space<vmem>>, vector<1x8x8xbf16>,
    } else {
    }
    %c8_i32 = arith.constant 8 : i32
    %3 = arith.muli %arg1, %c8_i32 : i32
    %4 = tpu.assume_multiple %3, 8 : i32
    %c0 = arith.constant 0 : index
    %5 = arith.index_cast %4 : i32 to index
    %c0_1 = arith.constant 0 : index
    %6 = vector.load %arg12[%c0, %5, %c0_1] : memref<4x8x8xbf16, #tpu.memory_space<vmem>>, vector<4x8x8xbf16>
    %c0_2 = arith.constant 0 : index
    %c0_3 = arith.constant 0 : index
    %c0_4 = arith.constant 0 : index
    %7 = vector.load %arg13[%c0_2, %c0_3, %c0_4] : memref<4x8x8xbf16, #tpu.memory_space<vmem>>, vector<4x8x8xbf16>
    "tpu.trace_start"() <{level = 10 : i32, message = "htd,hds->hts"}> : () -> ()
    %cst = arith.constant dense<0.000000e+00> : vector<4x8x8xf32>
    %8 = tpu.matmul %6, %7, %cst {dimension_numbers = #tpu.dot_dimension_numbers<[2], [1], [1], [2], [0, 0, 0, 1, 1, 2], [0], [0]>} : vector<4x8x8xbf16>, vector<4x8x8xbf16>, vector<4x8x8xf32> -> vector<4x8x8xf32>
    "tpu.trace_stop"() : () -> ()
    %cst_5 = arith.constant dense<0xFF800000> : vector<4x8xf32>
    %9 = vector.multi_reduction <maximumf>, %8, %cst_5 [2] : vector<4x8x8xf32> to vector<4x8xf32>
    %10 = vector.shape_cast %9 : vector<4x8xf32> to vector<4x8x1xf32>
    %11 = vector.broadcast %10 : vector<4x8x1xf32> to vector<4x8x8xf32>
    %12 = arith.subf %8, %11 : vector<4x8x8xf32>
    %13 = math.exp %12 : vector<4x8x8xf32>
    %cst_6 = arith.constant dense<0.000000e+00> : vector<4x8xf32>
    %14 = vector.multi_reduction <add>, %13, %cst_6 [2] : vector<4x8x8xf32> to vector<4x8xf32>
    %15 = vector.shape_cast %14 : vector<4x8xf32> to vector<4x8x1xf32>
    %16 = tpu.reciprocal %15 {approx = true} : vector<4x8x1xf32> -> vector<4x8x1xf32>
    %17 = vector.broadcast %16 : vector<4x8x1xf32> to vector<4x8x8xf32>
    %18 = arith.mulf %13, %17 : vector<4x8x8xf32>
    %19 = arith.truncf %18 : vector<4x8x8xf32> to vector<4x8x8xbf16>
    %c0_7 = arith.constant 0 : index
    %c0_8 = arith.constant 0 : index
    %c0_9 = arith.constant 0 : index
    %20 = vector.load %arg14[%c0_7, %c0_8, %c0_9] : memref<4x8x8xbf16, #tpu.memory_space<vmem>>, vector<4x8x8xbf16>
    "tpu.trace_start"() <{level = 10 : i32, message = "hts,hsd->htd"}> : () -> ()
    %cst_10 = arith.constant dense<0.000000e+00> : vector<4x8x8xf32>
    %21 = tpu.matmul %19, %20, %cst_10 {dimension_numbers = #tpu.dot_dimension_numbers<[2], [1], [1], [2], [0, 0, 0, 1, 1, 2], [0], [0]>} : vector<4x8x8xbf16>, vector<4x8x8xbf16>, vector<4x8x8xf32> -> vector<4x8x8xf32>
    "tpu.trace_stop"() : () -> ()
    %22 = vector.extract_strided_slice %21 {offsets = [0, 0, 0], sizes = [1, 8, 8], strides = [1, 1, 1]} : vector<4x8x8xf32> to vector<1x8x8xf32>
    %23 = vector.shape_cast %22 : vector<1x8x8xf32> to vector<8x8xf32>
    %24 = vector.extract_strided_slice %21 {offsets = [1, 0, 0], sizes = [1, 8, 8], strides = [1, 1, 1]} : vector<4x8x8xf32> to vector<1x8x8xf32>
    %25 = vector.shape_cast %24 : vector<1x8x8xf32> to vector<8x8xf32>
    %26 = vector.extract_strided_slice %21 {offsets = [2, 0, 0], sizes = [1, 8, 8], strides = [1, 1, 1]} : vector<4x8x8xf32> to vector<1x8x8xf32>
    %27 = vector.shape_cast %26 : vector<1x8x8xf32> to vector<8x8xf32>
    %28 = vector.extract_strided_slice %21 {offsets = [3, 0, 0], sizes = [1, 8, 8], strides = [1, 1, 1]} : vector<4x8x8xf32> to vector<1x8x8xf32>
    %29 = vector.shape_cast %28 : vector<1x8x8xf32> to vector<8x8xf32>
    %30 = tpu.concatenate %23, %25, %27, %29 in 1 : vector<8x8xf32>, vector<8x8xf32>, vector<8x8xf32>, vector<8x8xf32> -> vector<8x32xf32>
    %31 = arith.truncf %30 : vector<8x32xf32> to vector<8x32xbf16>
    %c0_11 = arith.constant 0 : index
    %c0_12 = arith.constant 0 : index
    %32 = vector.load %arg5[%c0_11, %c0_12] : memref<32x32xbf16, #tpu.memory_space<vmem>>, vector<32x32xbf16>
    %cst_13 = arith.constant dense<0.000000e+00> : vector<8x32xf32>
    %33 = tpu.matmul %31, %32, %cst_13 {dimension_numbers = #tpu.dot_dimension_numbers<[1], [0], [0], [1], [0, 0, 1, 1], [], []>} : vector<8x32xbf16>, vector<32x32xbf16>, vector<8x32xf32> -> vector<8x32xf32>
    %c0_14 = arith.constant 0 : index
    %c0_15 = arith.constant 0 : index
    %34 = vector.load %arg6[%c0_14, %c0_15] : memref<1x32xf32, #tpu.memory_space<vmem>>, vector<1x32xf32>
    %35 = vector.broadcast %34 : vector<1x32xf32> to vector<8x32xf32>
    %36 = arith.addf %33, %35 : vector<8x32xf32>
    %37 = arith.truncf %36 : vector<8x32xf32> to vector<8x32xbf16>
    %c0_16 = arith.constant 0 : index
    %c0_17 = arith.constant 0 : index
    %38 = vector.load %arg7[%c0_16, %c0_17] : memref<32x64xbf16, #tpu.memory_space<vmem>>, vector<32x64xbf16>
    %cst_18 = arith.constant dense<0.000000e+00> : vector<8x64xf32>
    %39 = tpu.matmul %37, %38, %cst_18 {dimension_numbers = #tpu.dot_dimension_numbers<[1], [0], [0], [1], [0, 0, 1, 1], [], []>} : vector<8x32xbf16>, vector<32x64xbf16>, vector<8x64xf32> -> vector<8x64xf32>
    %c0_19 = arith.constant 0 : index
    %c0_20 = arith.constant 0 : index
    %40 = vector.load %arg8[%c0_19, %c0_20] : memref<1x64xf32, #tpu.memory_space<vmem>>, vector<1x64xf32>
    %41 = vector.broadcast %40 : vector<1x64xf32> to vector<8x64xf32>
    %42 = arith.addf %39, %41 : vector<8x64xf32>
    %cst_21 = arith.constant 5.000000e-01 : f32
    %43 = vector.broadcast %cst_21 : f32 to vector<8x64xf32>
    %44 = arith.mulf %43, %42 : vector<8x64xf32>
    %cst_22 = arith.constant 0.707106769 : f32
    %45 = vector.broadcast %cst_22 : f32 to vector<8x64xf32>
    %46 = arith.mulf %42, %45 : vector<8x64xf32>
    %47 = math.erf %46 : vector<8x64xf32>
    %cst_23 = arith.constant 1.000000e+00 : f32
    %48 = vector.broadcast %cst_23 : f32 to vector<8x64xf32>
    %49 = arith.addf %48, %47 : vector<8x64xf32>
    %50 = arith.mulf %44, %49 : vector<8x64xf32>
    %51 = arith.truncf %50 : vector<8x64xf32> to vector<8x64xbf16>
    %c0_24 = arith.constant 0 : index
    %c0_25 = arith.constant 0 : index
    %52 = vector.load %arg9[%c0_24, %c0_25] : memref<64x32xbf16, #tpu.memory_space<vmem>>, vector<64x32xbf16>
    %cst_26 = arith.constant dense<0.000000e+00> : vector<8x32xf32>
    %53 = tpu.matmul %51, %52, %cst_26 {dimension_numbers = #tpu.dot_dimension_numbers<[1], [0], [0], [1], [0, 0, 1, 1], [], []>} : vector<8x64xbf16>, vector<64x32xbf16>, vector<8x32xf32> -> vector<8x32xf32>
    %c0_27 = arith.constant 0 : index
    %c0_28 = arith.constant 0 : index
    %54 = vector.load %arg10[%c0_27, %c0_28] : memref<1x32xf32, #tpu.memory_space<vmem>>, vector<1x32xf32>
    %55 = vector.broadcast %54 : vector<1x32xf32> to vector<8x32xf32>
    %56 = arith.addf %53, %55 : vector<8x32xf32>
    %c0_29 = arith.constant 0 : index
    %c0_30 = arith.constant 0 : index
    %c0_31 = arith.constant 0 : index
    %57 = vector.load %arg11[%c0_29, %c0_30, %c0_31] : memref<1x8x32xf32, #tpu.memory_space<vmem>>, vector<1x8x32xf32>
    %58 = vector.shape_cast %57 : vector<1x8x32xf32> to vector<8x32xf32>
    %59 = vector.shape_cast %56 : vector<8x32xf32> to vector<1x8x32xf32>
    tpu.vector_store %arg11[%c0_29, %c0_30, %c0_31], %59 {strides = array<i32>} : memref<1x8x32xf32, #tpu.memory_space<vmem>>, vector<1x8x32xf32>,
    return
  }
  func.func @transform_0(%arg0: i32, %arg1: i32) -> (i32, i32, i32) {
    %c0_i32 = arith.constant 0 : i32
    %c0_i32_0 = arith.constant 0 : i32
    %c0_i32_1 = arith.constant 0 : i32
    return %arg0, %c0_i32, %c0_i32_0 : i32, i32, i32
  }
  func.func @transform_1(%arg0: i32, %arg1: i32) -> (i32, i32) {
    %c0_i32 = arith.constant 0 : i32
    %c0_i32_0 = arith.constant 0 : i32
    %c0_i32_1 = arith.constant 0 : i32
    return %c0_i32, %c0_i32_0 : i32, i32
  }
  func.func @transform_2(%arg0: i32, %arg1: i32) -> (i32, i32) {
    %c0_i32 = arith.constant 0 : i32
    %c0_i32_0 = arith.constant 0 : i32
    %c0_i32_1 = arith.constant 0 : i32
    return %c0_i32, %c0_i32_0 : i32, i32
  }
  func.func @transform_3(%arg0: i32, %arg1: i32) -> (i32, i32) {
    %c0_i32 = arith.constant 0 : i32
    %c0_i32_0 = arith.constant 0 : i32
    %c0_i32_1 = arith.constant 0 : i32
    return %c0_i32, %c0_i32_0 : i32, i32
  }
  func.func @transform_4(%arg0: i32, %arg1: i32) -> (i32, i32) {
    %c0_i32 = arith.constant 0 : i32
    %c0_i32_0 = arith.constant 0 : i32
    %c0_i32_1 = arith.constant 0 : i32
    return %c0_i32, %c0_i32_0 : i32, i32
  }
  func.func @transform_5(%arg0: i32, %arg1: i32) -> (i32, i32) {
    %c0_i32 = arith.constant 0 : i32
    %c0_i32_0 = arith.constant 0 : i32
    %c0_i32_1 = arith.constant 0 : i32
    return %c0_i32, %c0_i32_0 : i32, i32
  }
  func.func @transform_6(%arg0: i32, %arg1: i32) -> (i32, i32) {
    %c0_i32 = arith.constant 0 : i32
    %c0_i32_0 = arith.constant 0 : i32
    %c0_i32_1 = arith.constant 0 : i32
    return %c0_i32, %c0_i32_0 : i32, i32
  }
  func.func @transform_7(%arg0: i32, %arg1: i32) -> (i32, i32) {
    %c0_i32 = arith.constant 0 : i32
    %c0_i32_0 = arith.constant 0 : i32
    %c0_i32_1 = arith.constant 0 : i32
    return %c0_i32, %c0_i32_0 : i32, i32
  }
  func.func @transform_8(%arg0: i32, %arg1: i32) -> (i32, i32) {
    %c0_i32 = arith.constant 0 : i32
    %c0_i32_0 = arith.constant 0 : i32
    %c0_i32_1 = arith.constant 0 : i32
    return %c0_i32, %c0_i32_0 : i32, i32
  }
  func.func @transform_9(%arg0: i32, %arg1: i32) -> (i32, i32, i32) {
    %c0_i32 = arith.constant 0 : i32
    %c0_i32_0 = arith.constant 0 : i32
    return %arg0, %arg1, %c0_i32 : i32, i32, i32
  }
}

module attributes {stable_mosaic.version = 11 : i64} {
  func.func @_transformer_block_kernel(%arg0: i32, %arg1: i32, %arg2: memref<1x8x32xbf16, #tpu.memory_space<vmem>>, %arg3: memref<32x96xbf16, #tpu.memory_space<vmem>>, %arg4: memref<1x96xf32, #tpu.memory_space<vmem>>, %arg5: memref<32x32xbf16, #tpu.memory_space<vmem>>, %arg6: memref<1x32xf32, #tpu.memory_space<vmem>>, %arg7: memref<32x64xbf16, #tpu.memory_space<vmem>>, %arg8: memref<1x64xf32, #tpu.memory_space<vmem>>, %arg9: memref<64x32xbf16, #tpu.memory_space<vmem>>, %arg10: memref<1x32xf32, #tpu.memory_space<vmem>>, %arg11: memref<1x8x32xf32, #tpu.memory_space<vmem>>, %arg12: memref<4x8x8xbf16, #tpu.memory_space<vmem>>, %arg13: memref<4x8x8xbf16, #tpu.memory_space<vmem>>, %arg14: memref<4x8x8xbf16, #tpu.memory_space<vmem>>) attributes {dimension_semantics = [#tpu.dimension_semantics<parallel>, #tpu.dimension_semantics<arbitrary>], iteration_bounds = array<i64: 2, 1>, scalar_prefetch = 0 : i64, scratch_operands = 3 : i64, tpu.core_type = #tpu.core_type<tc>, window_params = [{transform_indices = @transform_0, window_bounds = array<i64: 1, 8, 32>}, {pipeline_mode = #tpu.pipeline_mode<synchronous>, transform_indices = @transform_1, window_bounds = array<i64: 32, 96>}, {pipeline_mode = #tpu.pipeline_mode<synchronous>, transform_indices = @transform_2, window_bounds = array<i64: 1, 96>}, {pipeline_mode = #tpu.pipeline_mode<synchronous>, transform_indices = @transform_3, window_bounds = array<i64: 32, 32>}, {pipeline_mode = #tpu.pipeline_mode<synchronous>, transform_indices = @transform_4, window_bounds = array<i64: 1, 32>}, {pipeline_mode = #tpu.pipeline_mode<synchronous>, transform_indices = @transform_5, window_bounds = array<i64: 32, 64>}, {pipeline_mode = #tpu.pipeline_mode<synchronous>, transform_indices = @transform_6, window_bounds = array<i64: 1, 64>}, {pipeline_mode = #tpu.pipeline_mode<synchronous>, transform_indices = @transform_7, window_bounds = array<i64: 64, 32>}, {pipeline_mode = #tpu.pipeline_mode<synchronous>, transform_indices = @transform_8, window_bounds = array<i64: 1, 32>}, {transform_indices = @transform_9, window_bounds = array<i64: 1, 8, 32>}]} {
    %c0_i32 = arith.constant 0 : i32
    %0 = arith.cmpi eq, %arg1, %c0_i32 : i32
    %1 = arith.extui %0 : i1 to i32
    %c0_i32_0 = arith.constant 0 : i32
    %2 = arith.cmpi ne, %1, %c0_i32_0 : i32
    scf.if %2 {
      %c0_32 = arith.constant 0 : index
      %c0_33 = arith.constant 0 : index
      %c0_34 = arith.constant 0 : index
      %60 = vector.load %arg2[%c0_32, %c0_33, %c0_34] : memref<1x8x32xbf16, #tpu.memory_space<vmem>>, vector<1x8x32xbf16>
      %61 = vector.shape_cast %60 : vector<1x8x32xbf16> to vector<8x32xbf16>
      %c0_35 = arith.constant 0 : index
      %c0_36 = arith.constant 0 : index
      %62 = vector.load %arg3[%c0_35, %c0_36] : memref<32x96xbf16, #tpu.memory_space<vmem>>, vector<32x96xbf16>
      %cst_37 = arith.constant dense<0.000000e+00> : vector<8x96xf32>
      %63 = tpu.matmul %61, %62, %cst_37 {dimension_numbers = #tpu.dot_dimension_numbers<[1], [0], [0], [1], [0, 0, 1, 1], [], []>} : vector<8x32xbf16>, vector<32x96xbf16>, vector<8x96xf32> -> vector<8x96xf32>
      %c0_38 = arith.constant 0 : index
      %c0_39 = arith.constant 0 : index
      %64 = vector.load %arg4[%c0_38, %c0_39] : memref<1x96xf32, #tpu.memory_space<vmem>>, vector<1x96xf32>
      %65 = vector.broadcast %64 : vector<1x96xf32> to vector<8x96xf32>
      %66 = arith.addf %63, %65 : vector<8x96xf32>
      %67 = vector.extract_strided_slice %66 {offsets = [0, 0], sizes = [8, 8], strides = [1, 1]} : vector<8x96xf32> to vector<8x8xf32>
      %68 = arith.truncf %67 : vector<8x8xf32> to vector<8x8xbf16>
      %c0_40 = arith.constant 0 : index
      %c0_41 = arith.constant 0 : index
      %c0_42 = arith.constant 0 : index
      %69 = vector.load %arg12[%c0_40, %c0_41, %c0_42] : memref<4x8x8xbf16, #tpu.memory_space<vmem>>, vector<1x8x8xbf16>
      %70 = vector.shape_cast %69 : vector<1x8x8xbf16> to vector<8x8xbf16>
      %71 = vector.shape_cast %68 : vector<8x8xbf16> to vector<1x8x8xbf16>
      tpu.vector_store %arg12[%c0_40, %c0_41, %c0_42], %71 {strides = array<i32>} : memref<4x8x8xbf16, #tpu.memory_space<vmem>>, vector<1x8x8xbf16>,
      %72 = vector.extract_strided_slice %66 {offsets = [0, 32], sizes = [8, 8], strides = [1, 1]} : vector<8x96xf32> to vector<8x8xf32>
      %73 = tpu.transpose %72, [1, 0] : vector<8x8xf32> -> vector<8x8xf32>
      %74 = arith.truncf %73 : vector<8x8xf32> to vector<8x8xbf16>
      %c0_43 = arith.constant 0 : index
      %c0_44 = arith.constant 0 : index
      %c0_45 = arith.constant 0 : index
      %75 = vector.load %arg13[%c0_43, %c0_44, %c0_45] : memref<4x8x8xbf16, #tpu.memory_space<vmem>>, vector<1x8x8xbf16>
      %76 = vector.shape_cast %75 : vector<1x8x8xbf16> to vector<8x8xbf16>
      %77 = vector.shape_cast %74 : vector<8x8xbf16> to vector<1x8x8xbf16>
      tpu.vector_store %arg13[%c0_43, %c0_44, %c0_45], %77 {strides = array<i32>} : memref<4x8x8xbf16, #tpu.memory_space<vmem>>, vector<1x8x8xbf16>,
      %78 = vector.extract_strided_slice %66 {offsets = [0, 64], sizes = [8, 8], strides = [1, 1]} : vector<8x96xf32> to vector<8x8xf32>
      %79 = arith.truncf %78 : vector<8x8xf32> to vector<8x8xbf16>
      %c0_46 = arith.constant 0 : index
      %c0_47 = arith.constant 0 : index
      %c0_48 = arith.constant 0 : index
      %80 = vector.load %arg14[%c0_46, %c0_47, %c0_48] : memref<4x8x8xbf16, #tpu.memory_space<vmem>>, vector<1x8x8xbf16>
      %81 = vector.shape_cast %80 : vector<1x8x8xbf16> to vector<8x8xbf16>
      %82 = vector.shape_cast %79 : vector<8x8xbf16> to vector<1x8x8xbf16>
      tpu.vector_store %arg14[%c0_46, %c0_47, %c0_48], %82 {strides = array<i32>} : memref<4x8x8xbf16, #tpu.memory_space<vmem>>, vector<1x8x8xbf16>,
      %83 = vector.extract_strided_slice %66 {offsets = [0, 8], sizes = [8, 8], strides = [1, 1]} : vector<8x96xf32> to vector<8x8xf32>
      %84 = arith.truncf %83 : vector<8x8xf32> to vector<8x8xbf16>
      %c1 = arith.constant 1 : index
      %c0_49 = arith.constant 0 : index
      %c0_50 = arith.constant 0 : index
      %85 = vector.load %arg12[%c1, %c0_49, %c0_50] : memref<4x8x8xbf16, #tpu.memory_space<vmem>>, vector<1x8x8xbf16>
      %86 = vector.shape_cast %85 : vector<1x8x8xbf16> to vector<8x8xbf16>
      %87 = vector.shape_cast %84 : vector<8x8xbf16> to vector<1x8x8xbf16>
      tpu.vector_store %arg12[%c1, %c0_49, %c0_50], %87 {strides = array<i32>} : memref<4x8x8xbf16, #tpu.memory_space<vmem>>, vector<1x8x8xbf16>,
      %88 = vector.extract_strided_slice %66 {offsets = [0, 40], sizes = [8, 8], strides = [1, 1]} : vector<8x96xf32> to vector<8x8xf32>
      %89 = tpu.transpose %88, [1, 0] : vector<8x8xf32> -> vector<8x8xf32>
      %90 = arith.truncf %89 : vector<8x8xf32> to vector<8x8xbf16>
      %c1_51 = arith.constant 1 : index
      %c0_52 = arith.constant 0 : index
      %c0_53 = arith.constant 0 : index
      %91 = vector.load %arg13[%c1_51, %c0_52, %c0_53] : memref<4x8x8xbf16, #tpu.memory_space<vmem>>, vector<1x8x8xbf16>
      %92 = vector.shape_cast %91 : vector<1x8x8xbf16> to vector<8x8xbf16>
      %93 = vector.shape_cast %90 : vector<8x8xbf16> to vector<1x8x8xbf16>
      tpu.vector_store %arg13[%c1_51, %c0_52, %c0_53], %93 {strides = array<i32>} : memref<4x8x8xbf16, #tpu.memory_space<vmem>>, vector<1x8x8xbf16>,
      %94 = vector.extract_strided_slice %66 {offsets = [0, 72], sizes = [8, 8], strides = [1, 1]} : vector<8x96xf32> to vector<8x8xf32>
      %95 = arith.truncf %94 : vector<8x8xf32> to vector<8x8xbf16>
      %c1_54 = arith.constant 1 : index
      %c0_55 = arith.constant 0 : index
      %c0_56 = arith.constant 0 : index
      %96 = vector.load %arg14[%c1_54, %c0_55, %c0_56] : memref<4x8x8xbf16, #tpu.memory_space<vmem>>, vector<1x8x8xbf16>
      %97 = vector.shape_cast %96 : vector<1x8x8xbf16> to vector<8x8xbf16>
      %98 = vector.shape_cast %95 : vector<8x8xbf16> to vector<1x8x8xbf16>
      tpu.vector_store %arg14[%c1_54, %c0_55, %c0_56], %98 {strides = array<i32>} : memref<4x8x8xbf16, #tpu.memory_space<vmem>>, vector<1x8x8xbf16>,
      %99 = vector.extract_strided_slice %66 {offsets = [0, 16], sizes = [8, 8], strides = [1, 1]} : vector<8x96xf32> to vector<8x8xf32>
      %100 = arith.truncf %99 : vector<8x8xf32> to vector<8x8xbf16>
      %c2 = arith.constant 2 : index
      %c0_57 = arith.constant 0 : index
      %c0_58 = arith.constant 0 : index
      %101 = vector.load %arg12[%c2, %c0_57, %c0_58] : memref<4x8x8xbf16, #tpu.memory_space<vmem>>, vector<1x8x8xbf16>
      %102 = vector.shape_cast %101 : vector<1x8x8xbf16> to vector<8x8xbf16>
      %103 = vector.shape_cast %100 : vector<8x8xbf16> to vector<1x8x8xbf16>
      tpu.vector_store %arg12[%c2, %c0_57, %c0_58], %103 {strides = array<i32>} : memref<4x8x8xbf16, #tpu.memory_space<vmem>>, vector<1x8x8xbf16>,
      %104 = vector.extract_strided_slice %66 {offsets = [0, 48], sizes = [8, 8], strides = [1, 1]} : vector<8x96xf32> to vector<8x8xf32>
      %105 = tpu.transpose %104, [1, 0] : vector<8x8xf32> -> vector<8x8xf32>
      %106 = arith.truncf %105 : vector<8x8xf32> to vector<8x8xbf16>
      %c2_59 = arith.constant 2 : index
      %c0_60 = arith.constant 0 : index
      %c0_61 = arith.constant 0 : index
      %107 = vector.load %arg13[%c2_59, %c0_60, %c0_61] : memref<4x8x8xbf16, #tpu.memory_space<vmem>>, vector<1x8x8xbf16>
      %108 = vector.shape_cast %107 : vector<1x8x8xbf16> to vector<8x8xbf16>
      %109 = vector.shape_cast %106 : vector<8x8xbf16> to vector<1x8x8xbf16>
      tpu.vector_store %arg13[%c2_59, %c0_60, %c0_61], %109 {strides = array<i32>} : memref<4x8x8xbf16, #tpu.memory_space<vmem>>, vector<1x8x8xbf16>,
      %110 = vector.extract_strided_slice %66 {offsets = [0, 80], sizes = [8, 8], strides = [1, 1]} : vector<8x96xf32> to vector<8x8xf32>
      %111 = arith.truncf %110 : vector<8x8xf32> to vector<8x8xbf16>
      %c2_62 = arith.constant 2 : index
      %c0_63 = arith.constant 0 : index
      %c0_64 = arith.constant 0 : index
      %112 = vector.load %arg14[%c2_62, %c0_63, %c0_64] : memref<4x8x8xbf16, #tpu.memory_space<vmem>>, vector<1x8x8xbf16>
      %113 = vector.shape_cast %112 : vector<1x8x8xbf16> to vector<8x8xbf16>
      %114 = vector.shape_cast %111 : vector<8x8xbf16> to vector<1x8x8xbf16>
      tpu.vector_store %arg14[%c2_62, %c0_63, %c0_64], %114 {strides = array<i32>} : memref<4x8x8xbf16, #tpu.memory_space<vmem>>, vector<1x8x8xbf16>,
      %115 = vector.extract_strided_slice %66 {offsets = [0, 24], sizes = [8, 8], strides = [1, 1]} : vector<8x96xf32> to vector<8x8xf32>
      %116 = arith.truncf %115 : vector<8x8xf32> to vector<8x8xbf16>
      %c3 = arith.constant 3 : index
      %c0_65 = arith.constant 0 : index
      %c0_66 = arith.constant 0 : index
      %117 = vector.load %arg12[%c3, %c0_65, %c0_66] : memref<4x8x8xbf16, #tpu.memory_space<vmem>>, vector<1x8x8xbf16>
      %118 = vector.shape_cast %117 : vector<1x8x8xbf16> to vector<8x8xbf16>
      %119 = vector.shape_cast %116 : vector<8x8xbf16> to vector<1x8x8xbf16>
      tpu.vector_store %arg12[%c3, %c0_65, %c0_66], %119 {strides = array<i32>} : memref<4x8x8xbf16, #tpu.memory_space<vmem>>, vector<1x8x8xbf16>,
      %120 = vector.extract_strided_slice %66 {offsets = [0, 56], sizes = [8, 8], strides = [1, 1]} : vector<8x96xf32> to vector<8x8xf32>
      %121 = tpu.transpose %120, [1, 0] : vector<8x8xf32> -> vector<8x8xf32>
      %122 = arith.truncf %121 : vector<8x8xf32> to vector<8x8xbf16>
      %c3_67 = arith.constant 3 : index
      %c0_68 = arith.constant 0 : index
      %c0_69 = arith.constant 0 : index
      %123 = vector.load %arg13[%c3_67, %c0_68, %c0_69] : memref<4x8x8xbf16, #tpu.memory_space<vmem>>, vector<1x8x8xbf16>
      %124 = vector.shape_cast %123 : vector<1x8x8xbf16> to vector<8x8xbf16>
      %125 = vector.shape_cast %122 : vector<8x8xbf16> to vector<1x8x8xbf16>
      tpu.vector_store %arg13[%c3_67, %c0_68, %c0_69], %125 {strides = array<i32>} : memref<4x8x8xbf16, #tpu.memory_space<vmem>>, vector<1x8x8xbf16>,
      %126 = vector.extract_strided_slice %66 {offsets = [0, 88], sizes = [8, 8], strides = [1, 1]} : vector<8x96xf32> to vector<8x8xf32>
      %127 = arith.truncf %126 : vector<8x8xf32> to vector<8x8xbf16>
      %c3_70 = arith.constant 3 : index
      %c0_71 = arith.constant 0 : index
      %c0_72 = arith.constant 0 : index
      %128 = vector.load %arg14[%c3_70, %c0_71, %c0_72] : memref<4x8x8xbf16, #tpu.memory_space<vmem>>, vector<1x8x8xbf16>
      %129 = vector.shape_cast %128 : vector<1x8x8xbf16> to vector<8x8xbf16>
      %130 = vector.shape_cast %127 : vector<8x8xbf16> to vector<1x8x8xbf16>
      tpu.vector_store %arg14[%c3_70, %c0_71, %c0_72], %130 {strides = array<i32>} : memref<4x8x8xbf16, #tpu.memory_space<vmem>>, vector<1x8x8xbf16>,
    } else {
    }
    %c8_i32 = arith.constant 8 : i32
    %3 = arith.muli %arg1, %c8_i32 : i32
    %4 = tpu.assume_multiple %3, 8 : i32
    %c0 = arith.constant 0 : index
    %5 = arith.index_cast %4 : i32 to index
    %c0_1 = arith.constant 0 : index
    %6 = vector.load %arg12[%c0, %5, %c0_1] : memref<4x8x8xbf16, #tpu.memory_space<vmem>>, vector<4x8x8xbf16>
    %c0_2 = arith.constant 0 : index
    %c0_3 = arith.constant 0 : index
    %c0_4 = arith.constant 0 : index
    %7 = vector.load %arg13[%c0_2, %c0_3, %c0_4] : memref<4x8x8xbf16, #tpu.memory_space<vmem>>, vector<4x8x8xbf16>
    "tpu.trace_start"() <{level = 10 : i32, message = "htd,hds->hts"}> : () -> ()
    %cst = arith.constant dense<0.000000e+00> : vector<4x8x8xf32>
    %8 = tpu.matmul %6, %7, %cst {dimension_numbers = #tpu.dot_dimension_numbers<[2], [1], [1], [2], [0, 0, 0, 1, 1, 2], [0], [0]>} : vector<4x8x8xbf16>, vector<4x8x8xbf16>, vector<4x8x8xf32> -> vector<4x8x8xf32>
    "tpu.trace_stop"() : () -> ()
    %cst_5 = arith.constant dense<0xFF800000> : vector<4x8xf32>
    %9 = vector.multi_reduction <maximumf>, %8, %cst_5 [2] : vector<4x8x8xf32> to vector<4x8xf32>
    %10 = vector.shape_cast %9 : vector<4x8xf32> to vector<4x8x1xf32>
    %11 = vector.broadcast %10 : vector<4x8x1xf32> to vector<4x8x8xf32>
    %12 = arith.subf %8, %11 : vector<4x8x8xf32>
    %13 = math.exp %12 : vector<4x8x8xf32>
    %cst_6 = arith.constant dense<0.000000e+00> : vector<4x8xf32>
    %14 = vector.multi_reduction <add>, %13, %cst_6 [2] : vector<4x8x8xf32> to vector<4x8xf32>
    %15 = vector.shape_cast %14 : vector<4x8xf32> to vector<4x8x1xf32>
    %16 = tpu.reciprocal %15 {approx = true} : vector<4x8x1xf32> -> vector<4x8x1xf32>
    %17 = vector.broadcast %16 : vector<4x8x1xf32> to vector<4x8x8xf32>
    %18 = arith.mulf %13, %17 : vector<4x8x8xf32>
    %19 = arith.truncf %18 : vector<4x8x8xf32> to vector<4x8x8xbf16>
    %c0_7 = arith.constant 0 : index
    %c0_8 = arith.constant 0 : index
    %c0_9 = arith.constant 0 : index
    %20 = vector.load %arg14[%c0_7, %c0_8, %c0_9] : memref<4x8x8xbf16, #tpu.memory_space<vmem>>, vector<4x8x8xbf16>
    "tpu.trace_start"() <{level = 10 : i32, message = "hts,hsd->htd"}> : () -> ()
    %cst_10 = arith.constant dense<0.000000e+00> : vector<4x8x8xf32>
    %21 = tpu.matmul %19, %20, %cst_10 {dimension_numbers = #tpu.dot_dimension_numbers<[2], [1], [1], [2], [0, 0, 0, 1, 1, 2], [0], [0]>} : vector<4x8x8xbf16>, vector<4x8x8xbf16>, vector<4x8x8xf32> -> vector<4x8x8xf32>
    "tpu.trace_stop"() : () -> ()
    %22 = vector.extract_strided_slice %21 {offsets = [0, 0, 0], sizes = [1, 8, 8], strides = [1, 1, 1]} : vector<4x8x8xf32> to vector<1x8x8xf32>
    %23 = vector.shape_cast %22 : vector<1x8x8xf32> to vector<8x8xf32>
    %24 = vector.extract_strided_slice %21 {offsets = [1, 0, 0], sizes = [1, 8, 8], strides = [1, 1, 1]} : vector<4x8x8xf32> to vector<1x8x8xf32>
    %25 = vector.shape_cast %24 : vector<1x8x8xf32> to vector<8x8xf32>
    %26 = vector.extract_strided_slice %21 {offsets = [2, 0, 0], sizes = [1, 8, 8], strides = [1, 1, 1]} : vector<4x8x8xf32> to vector<1x8x8xf32>
    %27 = vector.shape_cast %26 : vector<1x8x8xf32> to vector<8x8xf32>
    %28 = vector.extract_strided_slice %21 {offsets = [3, 0, 0], sizes = [1, 8, 8], strides = [1, 1, 1]} : vector<4x8x8xf32> to vector<1x8x8xf32>
    %29 = vector.shape_cast %28 : vector<1x8x8xf32> to vector<8x8xf32>
    %30 = tpu.concatenate %23, %25, %27, %29 in 1 : vector<8x8xf32>, vector<8x8xf32>, vector<8x8xf32>, vector<8x8xf32> -> vector<8x32xf32>
    %31 = arith.truncf %30 : vector<8x32xf32> to vector<8x32xbf16>
    %c0_11 = arith.constant 0 : index
    %c0_12 = arith.constant 0 : index
    %32 = vector.load %arg5[%c0_11, %c0_12] : memref<32x32xbf16, #tpu.memory_space<vmem>>, vector<32x32xbf16>
    %cst_13 = arith.constant dense<0.000000e+00> : vector<8x32xf32>
    %33 = tpu.matmul %31, %32, %cst_13 {dimension_numbers = #tpu.dot_dimension_numbers<[1], [0], [0], [1], [0, 0, 1, 1], [], []>} : vector<8x32xbf16>, vector<32x32xbf16>, vector<8x32xf32> -> vector<8x32xf32>
    %c0_14 = arith.constant 0 : index
    %c0_15 = arith.constant 0 : index
    %34 = vector.load %arg6[%c0_14, %c0_15] : memref<1x32xf32, #tpu.memory_space<vmem>>, vector<1x32xf32>
    %35 = vector.broadcast %34 : vector<1x32xf32> to vector<8x32xf32>
    %36 = arith.addf %33, %35 : vector<8x32xf32>
    %37 = arith.truncf %36 : vector<8x32xf32> to vector<8x32xbf16>
    %c0_16 = arith.constant 0 : index
    %c0_17 = arith.constant 0 : index
    %38 = vector.load %arg7[%c0_16, %c0_17] : memref<32x64xbf16, #tpu.memory_space<vmem>>, vector<32x64xbf16>
    %cst_18 = arith.constant dense<0.000000e+00> : vector<8x64xf32>
    %39 = tpu.matmul %37, %38, %cst_18 {dimension_numbers = #tpu.dot_dimension_numbers<[1], [0], [0], [1], [0, 0, 1, 1], [], []>} : vector<8x32xbf16>, vector<32x64xbf16>, vector<8x64xf32> -> vector<8x64xf32>
    %c0_19 = arith.constant 0 : index
    %c0_20 = arith.constant 0 : index
    %40 = vector.load %arg8[%c0_19, %c0_20] : memref<1x64xf32, #tpu.memory_space<vmem>>, vector<1x64xf32>
    %41 = vector.broadcast %40 : vector<1x64xf32> to vector<8x64xf32>
    %42 = arith.addf %39, %41 : vector<8x64xf32>
    %cst_21 = arith.constant 5.000000e-01 : f32
    %43 = vector.broadcast %cst_21 : f32 to vector<8x64xf32>
    %44 = arith.mulf %43, %42 : vector<8x64xf32>
    %cst_22 = arith.constant 0.707106769 : f32
    %45 = vector.broadcast %cst_22 : f32 to vector<8x64xf32>
    %46 = arith.mulf %42, %45 : vector<8x64xf32>
    %47 = math.erf %46 : vector<8x64xf32>
    %cst_23 = arith.constant 1.000000e+00 : f32
    %48 = vector.broadcast %cst_23 : f32 to vector<8x64xf32>
    %49 = arith.addf %48, %47 : vector<8x64xf32>
    %50 = arith.mulf %44, %49 : vector<8x64xf32>
    %51 = arith.truncf %50 : vector<8x64xf32> to vector<8x64xbf16>
    %c0_24 = arith.constant 0 : index
    %c0_25 = arith.constant 0 : index
    %52 = vector.load %arg9[%c0_24, %c0_25] : memref<64x32xbf16, #tpu.memory_space<vmem>>, vector<64x32xbf16>
    %cst_26 = arith.constant dense<0.000000e+00> : vector<8x32xf32>
    %53 = tpu.matmul %51, %52, %cst_26 {dimension_numbers = #tpu.dot_dimension_numbers<[1], [0], [0], [1], [0, 0, 1, 1], [], []>} : vector<8x64xbf16>, vector<64x32xbf16>, vector<8x32xf32> -> vector<8x32xf32>
    %c0_27 = arith.constant 0 : index
    %c0_28 = arith.constant 0 : index
    %54 = vector.load %arg10[%c0_27, %c0_28] : memref<1x32xf32, #tpu.memory_space<vmem>>, vector<1x32xf32>
    %55 = vector.broadcast %54 : vector<1x32xf32> to vector<8x32xf32>
    %56 = arith.addf %53, %55 : vector<8x32xf32>
    %c0_29 = arith.constant 0 : index
    %c0_30 = arith.constant 0 : index
    %c0_31 = arith.constant 0 : index
    %57 = vector.load %arg11[%c0_29, %c0_30, %c0_31] : memref<1x8x32xf32, #tpu.memory_space<vmem>>, vector<1x8x32xf32>
    %58 = vector.shape_cast %57 : vector<1x8x32xf32> to vector<8x32xf32>
    %59 = vector.shape_cast %56 : vector<8x32xf32> to vector<1x8x32xf32>
    tpu.vector_store %arg11[%c0_29, %c0_30, %c0_31], %59 {strides = array<i32>} : memref<1x8x32xf32, #tpu.memory_space<vmem>>, vector<1x8x32xf32>,
    return
  }
  func.func @transform_0(%arg0: i32, %arg1: i32) -> (i32, i32, i32) {
    %c0_i32 = arith.constant 0 : i32
    %c0_i32_0 = arith.constant 0 : i32
    %c0_i32_1 = arith.constant 0 : i32
    return %arg0, %c0_i32, %c0_i32_0 : i32, i32, i32
  }
  func.func @transform_1(%arg0: i32, %arg1: i32) -> (i32, i32) {
    %c0_i32 = arith.constant 0 : i32
    %c0_i32_0 = arith.constant 0 : i32
    %c0_i32_1 = arith.constant 0 : i32
    return %c0_i32, %c0_i32_0 : i32, i32
  }
  func.func @transform_2(%arg0: i32, %arg1: i32) -> (i32, i32) {
    %c0_i32 = arith.constant 0 : i32
    %c0_i32_0 = arith.constant 0 : i32
    %c0_i32_1 = arith.constant 0 : i32
    return %c0_i32, %c0_i32_0 : i32, i32
  }
  func.func @transform_3(%arg0: i32, %arg1: i32) -> (i32, i32) {
    %c0_i32 = arith.constant 0 : i32
    %c0_i32_0 = arith.constant 0 : i32
    %c0_i32_1 = arith.constant 0 : i32
    return %c0_i32, %c0_i32_0 : i32, i32
  }
  func.func @transform_4(%arg0: i32, %arg1: i32) -> (i32, i32) {
    %c0_i32 = arith.constant 0 : i32
    %c0_i32_0 = arith.constant 0 : i32
    %c0_i32_1 = arith.constant 0 : i32
    return %c0_i32, %c0_i32_0 : i32, i32
  }
  func.func @transform_5(%arg0: i32, %arg1: i32) -> (i32, i32) {
    %c0_i32 = arith.constant 0 : i32
    %c0_i32_0 = arith.constant 0 : i32
    %c0_i32_1 = arith.constant 0 : i32
    return %c0_i32, %c0_i32_0 : i32, i32
  }
  func.func @transform_6(%arg0: i32, %arg1: i32) -> (i32, i32) {
    %c0_i32 = arith.constant 0 : i32
    %c0_i32_0 = arith.constant 0 : i32
    %c0_i32_1 = arith.constant 0 : i32
    return %c0_i32, %c0_i32_0 : i32, i32
  }
  func.func @transform_7(%arg0: i32, %arg1: i32) -> (i32, i32) {
    %c0_i32 = arith.constant 0 : i32
    %c0_i32_0 = arith.constant 0 : i32
    %c0_i32_1 = arith.constant 0 : i32
    return %c0_i32, %c0_i32_0 : i32, i32
  }
  func.func @transform_8(%arg0: i32, %arg1: i32) -> (i32, i32) {
    %c0_i32 = arith.constant 0 : i32
    %c0_i32_0 = arith.constant 0 : i32
    %c0_i32_1 = arith.constant 0 : i32
    return %c0_i32, %c0_i32_0 : i32, i32
  }
  func.func @transform_9(%arg0: i32, %arg1: i32) -> (i32, i32, i32) {
    %c0_i32 = arith.constant 0 : i32
    %c0_i32_0 = arith.constant 0 : i32
    return %arg0, %arg1, %c0_i32 : i32, i32, i32
  }
}

</mosaic_0001>

<llo_original>
// kernel: tpu_custom_call.1
$region0: #{tpu_custom_call.1}
  #allocation0 [shape = 'u32[]', space=smem, size = 0x4, offset = 0x4, fixed_abs, tag = 'smem constant byte address 0x4 - core index']
  #allocation1 [shape = 'u32[72,128]{1,0:T(1,128)}', space=vmem, size = 0x9000, scoped, tag = 'internal scratch']
  #allocation2 [shape = 'bf16[4,8,8]{2,1,0:T(8,128)(2,1)}', space=vmem, size = 0x2000, scoped, tag = 'scratch operand']
  #allocation3 [shape = 'bf16[4,8,8]{2,1,0:T(8,128)(2,1)}', space=vmem, size = 0x2000, scoped, tag = 'scratch operand']
  #allocation4 [shape = 'bf16[4,8,8]{2,1,0:T(8,128)(2,1)}', space=vmem, size = 0x2000, scoped, tag = 'scratch operand']
  %s0 = inlined_call_operand.hbm [shape: bf16[2,8,32], index: 0, kind: input, shape index: {}]
  %s1 = inlined_call_operand.vmem [shape: bf16[32,96], index: 1, kind: input, shape index: {}]
  %s2 = inlined_call_operand.vmem [shape: f32[1,96], index: 2, kind: input, shape index: {}]
  %s3 = inlined_call_operand.vmem [shape: bf16[32,32], index: 3, kind: input, shape index: {}]
  %s4 = inlined_call_operand.vmem [shape: f32[1,32], index: 4, kind: input, shape index: {}]
  %s5 = inlined_call_operand.vmem [shape: bf16[32,64], index: 5, kind: input, shape index: {}]
  %s6 = inlined_call_operand.vmem [shape: f32[1,64], index: 6, kind: input, shape index: {}]
  %s7 = inlined_call_operand.vmem [shape: bf16[64,32], index: 7, kind: input, shape index: {}]
  %s8 = inlined_call_operand.vmem [shape: f32[1,32], index: 8, kind: input, shape index: {}]
  %s9 = inlined_call_operand.hbm [shape: f32[2,8,32], index: 9, kind: output, shape index: {}]
  %s10 = sld [smem:[#allocation0]]
  $region77: #{tpu_custom_call.1} parent=0
    _
  %s12 = ssub.s32 1, %s10
  %s13 = scalar_select 0, %s12, %s10
  $region1: #{tpu_custom_call.1} parent=0
    #allocation5 [shape = 'u8[4096]{0}', space=vmem, size = 0x1000, scoped, tag = 'input window, operand 0']
    #allocation6 [shape = 's32[2]{0}', space=sflag, size = 0x8, scoped, tag = 'scoped memory for tpu_custom_call.1']
    #allocation7 [shape = 's32[2]{0}', space=sflag, size = 0x8, scoped, tag = 'scoped memory for tpu_custom_call.1']
    #allocation8 [shape = 'u8[8192]{0}', space=vmem, size = 0x2000, scoped, tag = 'output window, operand 0']
    %14 = vsyncpa [#allocation6], 0
    %s15 = scalar_lea.sflag [#allocation6], 1
    %16 = vsyncpa %s15, 0
    %17 = vsyncpa [#allocation7], 0
    %s18 = scalar_lea.sflag [#allocation7], 1
    %19 = vsyncpa %s18, 0
    loop: start=0, step=1, limit=4
    $region2: #{tpu_custom_call.1} parent=1 // loop_pre_header
      _
    $region3: #{tpu_custom_call.1} parent=1 // loop_header
      %s21 = sphi 0, %s25
      %p22 = scmp.ge.s32.totalorder %s21, 4
      %s28 = sphi 0, %s40
      %s29 = sphi 0, %s36
      %s30 = sphi 0, %s28
      %s31 = sphi 0, %s29
      %s32 = sphi 0, %s30
      %s33 = sphi 0, %s31
      %s43 = sphi 0, %s45
      %s46 = sphi 0, %s43
      %s47 = sphi 0, %s46
      %s63 = sphi 0, %s47
      %s67 = sphi 0, %s67
      %s69 = sphi 0, %s67
      %s70 = sphi 0, %s69
      %s84 = sphi 0, %s70
      %s88 = sphi 0, %s88
      %s90 = sphi 0, %s88
      %s91 = sphi 0, %s90
      %s105 = sphi 0, %s91
      %s109 = sphi 0, %s109
      %s111 = sphi 0, %s109
      %s112 = sphi 0, %s111
      %s126 = sphi 0, %s112
      %s130 = sphi 0, %s130
      %s132 = sphi 0, %s130
      %s133 = sphi 0, %s132
      %s147 = sphi 0, %s133
      %s151 = sphi 0, %s151
      %s153 = sphi 0, %s151
      %s154 = sphi 0, %s153
      %s168 = sphi 0, %s154
      %s172 = sphi 0, %s172
      %s174 = sphi 0, %s172
      %s175 = sphi 0, %s174
      %s189 = sphi 0, %s175
      %s193 = sphi 0, %s193
      %s195 = sphi 0, %s193
      %s196 = sphi 0, %s195
      %s210 = sphi 0, %s196
      %s214 = sphi 0, %s214
      %s216 = sphi 0, %s214
      %s217 = sphi 0, %s216
      %s231 = sphi 0, %s217
      %s239 = sphi 0, %s241
      %s242 = sphi 0, %s239
      %s243 = sphi 0, %s242
      %s259 = sphi 0, %s243
    $region4: #{tpu_custom_call.1} parent=1 // loop_header_branch
      %24 = sbr.rel (%p22) target = $region8
    $region5: #{tpu_custom_call.1} parent=1 // loop_body
      %s26 = ssub.s32 %s21, 1
      %s27 = ssub.s32 %s21, 2
      %s34 = sadd.s32 1, %s29
      %p35 = scmp.ge.s32.totalorder %s34, 1
      %s36 = scalar_select %p35, 0, %s34
      %s37 = sadd.s32 1, %s28
      %s38 = scalar_select %p35, %s37, %s28
      %p39 = scmp.ge.s32.totalorder %s38, 2
      %s40 = scalar_select %p39, 0, %s38
      %s41 = ssub.s32 %s28, %s40
      %p42 = scmp.eq.s32.totalorder %s41, 0
      %s44 = sadd.s32 %s43, 1
      %s45 = scalar_select %p42, %s43, %s44
      %p48 = pneg %p42
      %p49 = scmp.eq.s32.totalorder %s21, 1
      %p50 = por %p48, %p49
      %p51 = scmp.ne.s32.totalorder %s43, %s46
      %p52 = scmp.eq.s32.totalorder %s21, 0
      %p53 = por %p51, %p52
      %p54 = scmp.ne.s32.totalorder %s43, %s46
      %p55 = scmp.eq.s32.totalorder %s26, 1
      %p56 = por %p54, %p55
      %p57 = scmp.ne.s32.totalorder %s46, %s47
      %p58 = scmp.eq.s32.totalorder %s26, 0
      %p59 = por %p57, %p58
      %p60 = scmp.ne.s32.totalorder %s46, %s47
      %p61 = scmp.eq.s32.totalorder %s27, 1
      %p62 = por %p60, %p61
      %p64 = scmp.ne.s32.totalorder %s47, %s63
      %p65 = scmp.eq.s32.totalorder %s27, 0
      %p66 = por %p64, %p65
      %s68 = sadd.s32 %s67, 1
      %p71 = scmp.eq.s32.totalorder %s21, 1
      %p72 = scmp.ne.s32.totalorder %s67, %s69
      %p73 = scmp.eq.s32.totalorder %s21, 0
      %p74 = por %p72, %p73
      %p75 = scmp.ne.s32.totalorder %s67, %s69
      %p76 = scmp.eq.s32.totalorder %s26, 1
      %p77 = por %p75, %p76
      %p78 = scmp.ne.s32.totalorder %s69, %s70
      %p79 = scmp.eq.s32.totalorder %s26, 0
      %p80 = por %p78, %p79
      %p81 = scmp.ne.s32.totalorder %s69, %s70
      %p82 = scmp.eq.s32.totalorder %s27, 1
      %p83 = por %p81, %p82
      %p85 = scmp.ne.s32.totalorder %s70, %s84
      %p86 = scmp.eq.s32.totalorder %s27, 0
      %p87 = por %p85, %p86
      %s89 = sadd.s32 %s88, 1
      %p92 = scmp.eq.s32.totalorder %s21, 1
      %p93 = scmp.ne.s32.totalorder %s88, %s90
      %p94 = scmp.eq.s32.totalorder %s21, 0
      %p95 = por %p93, %p94
      %p96 = scmp.ne.s32.totalorder %s88, %s90
      %p97 = scmp.eq.s32.totalorder %s26, 1
      %p98 = por %p96, %p97
      %p99 = scmp.ne.s32.totalorder %s90, %s91
      %p100 = scmp.eq.s32.totalorder %s26, 0
      %p101 = por %p99, %p100
      %p102 = scmp.ne.s32.totalorder %s90, %s91
      %p103 = scmp.eq.s32.totalorder %s27, 1
      %p104 = por %p102, %p103
      %p106 = scmp.ne.s32.totalorder %s91, %s105
      %p107 = scmp.eq.s32.totalorder %s27, 0
      %p108 = por %p106, %p107
      %s110 = sadd.s32 %s109, 1
      %p113 = scmp.eq.s32.totalorder %s21, 1
      %p114 = scmp.ne.s32.totalorder %s109, %s111
      %p115 = scmp.eq.s32.totalorder %s21, 0
      %p116 = por %p114, %p115
      %p117 = scmp.ne.s32.totalorder %s109, %s111
      %p118 = scmp.eq.s32.totalorder %s26, 1
      %p119 = por %p117, %p118
      %p120 = scmp.ne.s32.totalorder %s111, %s112
      %p121 = scmp.eq.s32.totalorder %s26, 0
      %p122 = por %p120, %p121
      %p123 = scmp.ne.s32.totalorder %s111, %s112
      %p124 = scmp.eq.s32.totalorder %s27, 1
      %p125 = por %p123, %p124
      %p127 = scmp.ne.s32.totalorder %s112, %s126
      %p128 = scmp.eq.s32.totalorder %s27, 0
      %p129 = por %p127, %p128
      %s131 = sadd.s32 %s130, 1
      %p134 = scmp.eq.s32.totalorder %s21, 1
      %p135 = scmp.ne.s32.totalorder %s130, %s132
      %p136 = scmp.eq.s32.totalorder %s21, 0
      %p137 = por %p135, %p136
      %p138 = scmp.ne.s32.totalorder %s130, %s132
      %p139 = scmp.eq.s32.totalorder %s26, 1
      %p140 = por %p138, %p139
      %p141 = scmp.ne.s32.totalorder %s132, %s133
      %p142 = scmp.eq.s32.totalorder %s26, 0
      %p143 = por %p141, %p142
      %p144 = scmp.ne.s32.totalorder %s132, %s133
      %p145 = scmp.eq.s32.totalorder %s27, 1
      %p146 = por %p144, %p145
      %p148 = scmp.ne.s32.totalorder %s133, %s147
      %p149 = scmp.eq.s32.totalorder %s27, 0
      %p150 = por %p148, %p149
      %s152 = sadd.s32 %s151, 1
      %p155 = scmp.eq.s32.totalorder %s21, 1
      %p156 = scmp.ne.s32.totalorder %s151, %s153
      %p157 = scmp.eq.s32.totalorder %s21, 0
      %p158 = por %p156, %p157
      %p159 = scmp.ne.s32.totalorder %s151, %s153
      %p160 = scmp.eq.s32.totalorder %s26, 1
      %p161 = por %p159, %p160
      %p162 = scmp.ne.s32.totalorder %s153, %s154
      %p163 = scmp.eq.s32.totalorder %s26, 0
      %p164 = por %p162, %p163
      %p165 = scmp.ne.s32.totalorder %s153, %s154
      %p166 = scmp.eq.s32.totalorder %s27, 1
      %p167 = por %p165, %p166
      %p169 = scmp.ne.s32.totalorder %s154, %s168
      %p170 = scmp.eq.s32.totalorder %s27, 0
      %p171 = por %p169, %p170
      %s173 = sadd.s32 %s172, 1
      %p176 = scmp.eq.s32.totalorder %s21, 1
      %p177 = scmp.ne.s32.totalorder %s172, %s174
      %p178 = scmp.eq.s32.totalorder %s21, 0
      %p179 = por %p177, %p178
      %p180 = scmp.ne.s32.totalorder %s172, %s174
      %p181 = scmp.eq.s32.totalorder %s26, 1
      %p182 = por %p180, %p181
      %p183 = scmp.ne.s32.totalorder %s174, %s175
      %p184 = scmp.eq.s32.totalorder %s26, 0
      %p185 = por %p183, %p184
      %p186 = scmp.ne.s32.totalorder %s174, %s175
      %p187 = scmp.eq.s32.totalorder %s27, 1
      %p188 = por %p186, %p187
      %p190 = scmp.ne.s32.totalorder %s175, %s189
      %p191 = scmp.eq.s32.totalorder %s27, 0
      %p192 = por %p190, %p191
      %s194 = sadd.s32 %s193, 1
      %p197 = scmp.eq.s32.totalorder %s21, 1
      %p198 = scmp.ne.s32.totalorder %s193, %s195
      %p199 = scmp.eq.s32.totalorder %s21, 0
      %p200 = por %p198, %p199
      %p201 = scmp.ne.s32.totalorder %s193, %s195
      %p202 = scmp.eq.s32.totalorder %s26, 1
      %p203 = por %p201, %p202
      %p204 = scmp.ne.s32.totalorder %s195, %s196
      %p205 = scmp.eq.s32.totalorder %s26, 0
      %p206 = por %p204, %p205
      %p207 = scmp.ne.s32.totalorder %s195, %s196
      %p208 = scmp.eq.s32.totalorder %s27, 1
      %p209 = por %p207, %p208
      %p211 = scmp.ne.s32.totalorder %s196, %s210
      %p212 = scmp.eq.s32.totalorder %s27, 0
      %p213 = por %p211, %p212
      %s215 = sadd.s32 %s214, 1
      %p218 = scmp.eq.s32.totalorder %s21, 1
      %p219 = scmp.ne.s32.totalorder %s214, %s216
      %p220 = scmp.eq.s32.totalorder %s21, 0
      %p221 = por %p219, %p220
      %p222 = scmp.ne.s32.totalorder %s214, %s216
      %p223 = scmp.eq.s32.totalorder %s26, 1
      %p224 = por %p222, %p223
      %p225 = scmp.ne.s32.totalorder %s216, %s217
      %p226 = scmp.eq.s32.totalorder %s26, 0
      %p227 = por %p225, %p226
      %p228 = scmp.ne.s32.totalorder %s216, %s217
      %p229 = scmp.eq.s32.totalorder %s27, 1
      %p230 = por %p228, %p229
      %p232 = scmp.ne.s32.totalorder %s217, %s231
      %p233 = scmp.eq.s32.totalorder %s27, 0
      %p234 = por %p232, %p233
      %s235 = ssub.s32 %s28, %s40
      %s236 = ssub.s32 %s29, %s36
      %s237 = sor.u32 %s235, %s236
      %p238 = scmp.eq.s32.totalorder %s237, 0
      %s240 = sadd.s32 %s239, 1
      %s241 = scalar_select %p238, %s239, %s240
      %p244 = pneg %p238
      %p245 = scmp.eq.s32.totalorder %s21, 1
      %p246 = por %p244, %p245
      %p247 = scmp.ne.s32.totalorder %s239, %s242
      %p248 = scmp.eq.s32.totalorder %s21, 0
      %p249 = por %p247, %p248
      %p250 = scmp.ne.s32.totalorder %s239, %s242
      %p251 = scmp.eq.s32.totalorder %s26, 1
      %p252 = por %p250, %p251
      %p253 = scmp.ne.s32.totalorder %s242, %s243
      %p254 = scmp.eq.s32.totalorder %s26, 0
      %p255 = por %p253, %p254
      %p256 = scmp.ne.s32.totalorder %s242, %s243
      %p257 = scmp.eq.s32.totalorder %s27, 1
      %p258 = por %p256, %p257
      %p260 = scmp.ne.s32.totalorder %s243, %s259
      %p261 = scmp.eq.s32.totalorder %s27, 0
      %p262 = por %p260, %p261
      %p263 = scmp.le.s32.totalorder 1, %s21
      %p264 = scmp.lt.s32.totalorder %s21, 3
      %p265 = pnand %p263, %p264
      %p266 = pneg %p265
      // Predicated region
      $region9: #{tpu_custom_call.1} parent=5 // pred_check
        _
      $region10: #{tpu_custom_call.1} parent=5 // pred_check_branch
        %268 = sbr.rel (%p265) target = $region12
      $region11: #{tpu_custom_call.1} parent=5 // pred_region
        %s269 = ssub.s32 %s21, 1
        // Predicated region
        $region13: #{tpu_custom_call.1} parent=11 // pred_check
          %p270 = pneg %p80
        $region14: #{tpu_custom_call.1} parent=11 // pred_check_branch
          %272 = sbr.rel (%p270) target = $region16
        $region15: #{tpu_custom_call.1} parent=11 // pred_region
          _
        $region16: #{tpu_custom_call.1} parent=11 // pred_fallthru
          _
        // Predicated region
        $region17: #{tpu_custom_call.1} parent=11 // pred_check
          %p273 = pneg %p101
        $region18: #{tpu_custom_call.1} parent=11 // pred_check_branch
          %275 = sbr.rel (%p273) target = $region20
        $region19: #{tpu_custom_call.1} parent=11 // pred_region
          _
        $region20: #{tpu_custom_call.1} parent=11 // pred_fallthru
          _
        // Predicated region
        $region21: #{tpu_custom_call.1} parent=11 // pred_check
          %p276 = pneg %p122
        $region22: #{tpu_custom_call.1} parent=11 // pred_check_branch
          %278 = sbr.rel (%p276) target = $region24
        $region23: #{tpu_custom_call.1} parent=11 // pred_region
          _
        $region24: #{tpu_custom_call.1} parent=11 // pred_fallthru
          _
        // Predicated region
        $region25: #{tpu_custom_call.1} parent=11 // pred_check
          %p279 = pneg %p143
        $region26: #{tpu_custom_call.1} parent=11 // pred_check_branch
          %281 = sbr.rel (%p279) target = $region28
        $region27: #{tpu_custom_call.1} parent=11 // pred_region
          _
        $region28: #{tpu_custom_call.1} parent=11 // pred_fallthru
          _
        // Predicated region
        $region29: #{tpu_custom_call.1} parent=11 // pred_check
          %p282 = pneg %p164
        $region30: #{tpu_custom_call.1} parent=11 // pred_check_branch
          %284 = sbr.rel (%p282) target = $region32
        $region31: #{tpu_custom_call.1} parent=11 // pred_region
          _
        $region32: #{tpu_custom_call.1} parent=11 // pred_fallthru
          _
        // Predicated region
        $region33: #{tpu_custom_call.1} parent=11 // pred_check
          %p285 = pneg %p185
        $region34: #{tpu_custom_call.1} parent=11 // pred_check_branch
          %287 = sbr.rel (%p285) target = $region36
        $region35: #{tpu_custom_call.1} parent=11 // pred_region
          _
        $region36: #{tpu_custom_call.1} parent=11 // pred_fallthru
          _
        // Predicated region
        $region37: #{tpu_custom_call.1} parent=11 // pred_check
          %p288 = pneg %p206
        $region38: #{tpu_custom_call.1} parent=11 // pred_check_branch
          %290 = sbr.rel (%p288) target = $region40
        $region39: #{tpu_custom_call.1} parent=11 // pred_region
          _
        $region40: #{tpu_custom_call.1} parent=11 // pred_fallthru
          _
        // Predicated region
        $region41: #{tpu_custom_call.1} parent=11 // pred_check
          %p291 = pneg %p227
        $region42: #{tpu_custom_call.1} parent=11 // pred_check_branch
          %293 = sbr.rel (%p291) target = $region44
        $region43: #{tpu_custom_call.1} parent=11 // pred_region
          _
        $region44: #{tpu_custom_call.1} parent=11 // pred_fallthru
          _
      $region12: #{tpu_custom_call.1} parent=5 // pred_fallthru
        _
      %p294 = scmp.lt.s32.totalorder %s21, 2
      // Predicated region
      $region45: #{tpu_custom_call.1} parent=5 // pred_check
        %p295 = pneg %p294
      $region46: #{tpu_custom_call.1} parent=5 // pred_check_branch
        %297 = sbr.rel (%p295) target = $region48
      $region47: #{tpu_custom_call.1} parent=5 // pred_region
        // Predicated region
        $region49: #{tpu_custom_call.1} parent=47 // pred_check
          %p298 = pneg %p53
        $region50: #{tpu_custom_call.1} parent=47 // pred_check_branch
          %300 = sbr.rel (%p298) target = $region52
        $region51: #{tpu_custom_call.1} parent=47 // pred_region
          %s301 = sand.u32 %s43, 1
          %s302 = scalar_lea.sflag [#allocation6], %s301
          %s303 = sand.u32 %s43, 1
          %s304 = smul.addr %s303, 4
          %s305 = scalar_lea.vmem [#allocation5], %s304
          %307 = vsyncadd %s302, 0
          %s308 = smul.addr %s28, 4
          %s309 = scalar_lea.hbm %s0, %s308
          %s311 = sshll.u32 %s309, 4
          %s312 = int_to_ptr.hbm [resolvable:$true] %s311
          %s313 = sshll.u32 %s305, 4
          %s314 = int_to_ptr.vmem [resolvable:$true] %s313
          %316 = dma.hbm_to_vmem [thread:$0]  %s312, 64, %s314, %s302
        $region52: #{tpu_custom_call.1} parent=47 // pred_fallthru
          _
      $region48: #{tpu_custom_call.1} parent=5 // pred_fallthru
        _
      %p317 = scmp.le.s32.totalorder 1, %s21
      %p318 = scmp.lt.s32.totalorder %s21, 3
      %p319 = pnand %p317, %p318
      %p320 = pneg %p319
      // Predicated region
      $region53: #{tpu_custom_call.1} parent=5 // pred_check
        _
      $region54: #{tpu_custom_call.1} parent=5 // pred_check_branch
        %322 = sbr.rel (%p319) target = $region56
      $region55: #{tpu_custom_call.1} parent=5 // pred_region
        %s323 = ssub.s32 %s21, 1
        %s324 = sand.u32 %s46, 1
        %s325 = scalar_lea.sflag [#allocation6], %s324
        %s326 = sand.u32 %s46, 1
        %s327 = smul.addr %s326, 4
        %s328 = scalar_lea.vmem [#allocation5], %s327
        // Predicated region
        $region57: #{tpu_custom_call.1} parent=55 // pred_check
          %p329 = pneg %p59
        $region58: #{tpu_custom_call.1} parent=55 // pred_check_branch
          %331 = sbr.rel (%p329) target = $region60
        $region59: #{tpu_custom_call.1} parent=55 // pred_region
          %333 = dma.done %s325, 64
        $region60: #{tpu_custom_call.1} parent=55 // pred_fallthru
          _
        %s334 = sand.u32 %s46, 1
        %s335 = scalar_lea.sflag [#allocation6], %s334
        %s336 = sand.u32 %s46, 1
        %s337 = smul.addr %s336, 4
        %s338 = scalar_lea.vmem [#allocation5], %s337
        %p339 = pneg %p59
        %p340 = pneg %p56
        %p341 = pneg %p80
        %p342 = pneg %p77
        %p343 = pneg %p101
        %p344 = pneg %p98
        %p345 = pneg %p122
        %p346 = pneg %p119
        %p347 = pneg %p143
        %p348 = pneg %p140
        %p349 = pneg %p164
        %p350 = pneg %p161
        %p351 = pneg %p185
        %p352 = pneg %p182
        %p353 = pneg %p206
        %p354 = pneg %p203
        %p355 = pneg %p227
        %p356 = pneg %p224
        %p357 = pneg %p255
        %p358 = pneg %p252
        %s359 = sand.u32 %s242, 1
        %s360 = scalar_lea.sflag [#allocation7], %s359
        %s361 = sand.u32 %s242, 1
        %s362 = smul.addr %s361, 8
        %s363 = scalar_lea.vmem [#allocation8], %s362
        %p365 = scmp.eq.s32.totalorder %s31, 0
        // Predicated region
        $region61: #{tpu_custom_call.1} parent=55 // pred_check
          %p366 = pneg %p365
        $region62: #{tpu_custom_call.1} parent=55 // pred_check_branch
          %368 = sbr.rel (%p366) target = $region64
        $region63: #{tpu_custom_call.1} parent=55 // pred_region
          %v369 = vld [vmem:[%s328] sm:$0xf]
          %v370 = vld [vmem:[%s1] sm:$0xf]
          %v371 = vld [vmem:[%s1 + $0x4] sm:$0xf]
          %v372 = vld [vmem:[%s1 + $0x8] sm:$0xf]
          %v373 = vld [vmem:[%s1 + $0xc] sm:$0xf]
          %v374 = vld [vmem:[%s2] sm:$0x1]
          %v376 = vperm.slane %v374, 0
          %v382 = vunpack.c.l.b16 %v370
          %v383 = vunpack.c.l.b16 %v371
          %v384 = vunpack.c.l.b16 %v372
          %v385 = vunpack.c.l.b16 %v373
          %v386 = vpack.c.b16 %v383, %v382
          %v387 = vpack.c.b16 %v385, %v384
          %vm390 = vcmask 261120
          %v392 = vsel %vm390, %v369, 0
          %394 = vmatpush.bf16.msra.mxu0 0
          %395 = vmatpush.bf16.msra.mxu0 0
          %396 = vmatpush.bf16.msra.mxu0 0
          %397 = vmatpush.bf16.msra.mxu0 0
          %398 = vmatpush.bf16.msra.mxu0 0
          %399 = vmatpush.bf16.msra.mxu0 0
          %400 = vmatpush.bf16.msra.mxu0 %v387
          %401 = vmatpush.bf16.msra.mxu0 %v386
          %402 = vmatmul.bf16.gmra.mxu0 %v392
          %v403 = vpop.f32.mrf.mxu0
          %v404 = vadd.f32 %v376, %v403
          %v405 = vpop.f32.mrf.mxu0
          %406 = vdwg.mxu0
          %v407 = vpack.c.bf16 %v404, %v404
          %vm408 = vcmask 60416
          %409 = vst.msk [vmem:[#allocation2] sm:$0xf] %vm408, %v407
          %411 = vrot.lane.b32.xlu0 %v404, 96
          %v412 = vpop.permute.xlu0 %411
          %414 = vxpose.xlu0.b32.start [1/16] %v412, 128
          %415 = vxpose.xlu0.b32.cont [2/16] 0.0, 128
          %416 = vxpose.xlu0.b32.cont [3/16] 0.0, 128
          %417 = vxpose.xlu0.b32.cont [4/16] 0.0, 128
          %418 = vxpose.xlu0.b32.cont [5/16] 0.0, 128
          %419 = vxpose.xlu0.b32.cont [6/16] 0.0, 128
          %420 = vxpose.xlu0.b32.cont [7/16] 0.0, 128
          %421 = vxpose.xlu0.b32.cont [8/16] 0.0, 128
          %422 = vxpose.xlu0.b32.cont [9/16] 0.0, 128
          %423 = vxpose.xlu0.b32.cont [10/16] 0.0, 128
          %424 = vxpose.xlu0.b32.cont [11/16] 0.0, 128
          %425 = vxpose.xlu0.b32.cont [12/16] 0.0, 128
          %426 = vxpose.xlu0.b32.cont [13/16] 0.0, 128
          %427 = vxpose.xlu0.b32.cont [14/16] 0.0, 128
          %428 = vxpose.xlu0.b32.cont [15/16] 0.0, 128
          %429 = vxpose.xlu0.b32.end [16/16] 0.0, 128
          %v430 = vpop.trf.xlu0
          %v431 = vpop.trf.xlu0
          %v432 = vpop.trf.xlu0
          %v433 = vpop.trf.xlu0
          %v434 = vpop.trf.xlu0
          %v435 = vpop.trf.xlu0
          %v436 = vpop.trf.xlu0
          %v437 = vpop.trf.xlu0
          %v438 = vpop.trf.xlu0
          %v439 = vpop.trf.xlu0
          %v440 = vpop.trf.xlu0
          %v441 = vpop.trf.xlu0
          %v442 = vpop.trf.xlu0
          %v443 = vpop.trf.xlu0
          %v444 = vpop.trf.xlu0
          %v445 = vpop.trf.xlu0
          %v446 = vpack.c.bf16 %v430, %v430
          %447 = vst.msk [vmem:[#allocation3] sm:$0xf] %vm408, %v446
          %449 = vrot.lane.b32.xlu0 %v407, 64
          %v450 = vpop.permute.xlu0 %449
          %452 = vst.msk [vmem:[#allocation4] sm:$0xf] %vm408, %v450
          %453 = vrot.lane.b32.xlu0 %v407, 120
          %v454 = vpop.permute.xlu0 %453
          %s456 = scalar_lea.vmem [#allocation2], 4
          %457 = vst.msk [vmem:[%s456] sm:$0xf] %vm408, %v454
          %458 = vrot.lane.b32.xlu0 %v404, 88
          %v459 = vpop.permute.xlu0 %458
          %461 = vxpose.xlu0.b32.start [1/16] %v459, 128
          %462 = vxpose.xlu0.b32.cont [2/16] 0.0, 128
          %463 = vxpose.xlu0.b32.cont [3/16] 0.0, 128
          %464 = vxpose.xlu0.b32.cont [4/16] 0.0, 128
          %465 = vxpose.xlu0.b32.cont [5/16] 0.0, 128
          %466 = vxpose.xlu0.b32.cont [6/16] 0.0, 128
          %467 = vxpose.xlu0.b32.cont [7/16] 0.0, 128
          %468 = vxpose.xlu0.b32.cont [8/16] 0.0, 128
          %469 = vxpose.xlu0.b32.cont [9/16] 0.0, 128
          %470 = vxpose.xlu0.b32.cont [10/16] 0.0, 128
          %471 = vxpose.xlu0.b32.cont [11/16] 0.0, 128
          %472 = vxpose.xlu0.b32.cont [12/16] 0.0, 128
          %473 = vxpose.xlu0.b32.cont [13/16] 0.0, 128
          %474 = vxpose.xlu0.b32.cont [14/16] 0.0, 128
          %475 = vxpose.xlu0.b32.cont [15/16] 0.0, 128
          %476 = vxpose.xlu0.b32.end [16/16] 0.0, 128
          %v477 = vpop.trf.xlu0
          %v478 = vpop.trf.xlu0
          %v479 = vpop.trf.xlu0
          %v480 = vpop.trf.xlu0
          %v481 = vpop.trf.xlu0
          %v482 = vpop.trf.xlu0
          %v483 = vpop.trf.xlu0
          %v484 = vpop.trf.xlu0
          %v485 = vpop.trf.xlu0
          %v486 = vpop.trf.xlu0
          %v487 = vpop.trf.xlu0
          %v488 = vpop.trf.xlu0
          %v489 = vpop.trf.xlu0
          %v490 = vpop.trf.xlu0
          %v491 = vpop.trf.xlu0
          %v492 = vpop.trf.xlu0
          %v493 = vpack.c.bf16 %v477, %v477
          %s494 = scalar_lea.vmem [#allocation3], 4
          %495 = vst.msk [vmem:[%s494] sm:$0xf] %vm408, %v493
          %496 = vrot.lane.b32.xlu0 %v407, 56
          %v497 = vpop.permute.xlu0 %496
          %s499 = scalar_lea.vmem [#allocation4], 4
          %500 = vst.msk [vmem:[%s499] sm:$0xf] %vm408, %v497
          %501 = vrot.lane.b32.xlu0 %v407, 112
          %v502 = vpop.permute.xlu0 %501
          %s504 = scalar_lea.vmem [#allocation2], 8
          %505 = vst.msk [vmem:[%s504] sm:$0xf] %vm408, %v502
          %506 = vrot.lane.b32.xlu0 %v404, 80
          %v507 = vpop.permute.xlu0 %506
          %509 = vxpose.xlu0.b32.start [1/16] %v507, 128
          %510 = vxpose.xlu0.b32.cont [2/16] 0.0, 128
          %511 = vxpose.xlu0.b32.cont [3/16] 0.0, 128
          %512 = vxpose.xlu0.b32.cont [4/16] 0.0, 128
          %513 = vxpose.xlu0.b32.cont [5/16] 0.0, 128
          %514 = vxpose.xlu0.b32.cont [6/16] 0.0, 128
          %515 = vxpose.xlu0.b32.cont [7/16] 0.0, 128
          %516 = vxpose.xlu0.b32.cont [8/16] 0.0, 128
          %517 = vxpose.xlu0.b32.cont [9/16] 0.0, 128
          %518 = vxpose.xlu0.b32.cont [10/16] 0.0, 128
          %519 = vxpose.xlu0.b32.cont [11/16] 0.0, 128
          %520 = vxpose.xlu0.b32.cont [12/16] 0.0, 128
          %521 = vxpose.xlu0.b32.cont [13/16] 0.0, 128
          %522 = vxpose.xlu0.b32.cont [14/16] 0.0, 128
          %523 = vxpose.xlu0.b32.cont [15/16] 0.0, 128
          %524 = vxpose.xlu0.b32.end [16/16] 0.0, 128
          %v525 = vpop.trf.xlu0
          %v526 = vpop.trf.xlu0
          %v527 = vpop.trf.xlu0
          %v528 = vpop.trf.xlu0
          %v529 = vpop.trf.xlu0
          %v530 = vpop.trf.xlu0
          %v531 = vpop.trf.xlu0
          %v532 = vpop.trf.xlu0
          %v533 = vpop.trf.xlu0
          %v534 = vpop.trf.xlu0
          %v535 = vpop.trf.xlu0
          %v536 = vpop.trf.xlu0
          %v537 = vpop.trf.xlu0
          %v538 = vpop.trf.xlu0
          %v539 = vpop.trf.xlu0
          %v540 = vpop.trf.xlu0
          %v541 = vpack.c.bf16 %v525, %v525
          %s542 = scalar_lea.vmem [#allocation3], 8
          %543 = vst.msk [vmem:[%s542] sm:$0xf] %vm408, %v541
          %544 = vrot.lane.b32.xlu0 %v407, 48
          %v545 = vpop.permute.xlu0 %544
          %s547 = scalar_lea.vmem [#allocation4], 8
          %548 = vst.msk [vmem:[%s547] sm:$0xf] %vm408, %v545
          %549 = vrot.lane.b32.xlu0 %v407, 104
          %v550 = vpop.permute.xlu0 %549
          %s552 = scalar_lea.vmem [#allocation2], 12
          %553 = vst.msk [vmem:[%s552] sm:$0xf] %vm408, %v550
          %554 = vrot.lane.b32.xlu0 %v404, 72
          %v555 = vpop.permute.xlu0 %554
          %557 = vxpose.xlu0.b32.start [1/16] %v555, 128
          %558 = vxpose.xlu0.b32.cont [2/16] 0.0, 128
          %559 = vxpose.xlu0.b32.cont [3/16] 0.0, 128
          %560 = vxpose.xlu0.b32.cont [4/16] 0.0, 128
          %561 = vxpose.xlu0.b32.cont [5/16] 0.0, 128
          %562 = vxpose.xlu0.b32.cont [6/16] 0.0, 128
          %563 = vxpose.xlu0.b32.cont [7/16] 0.0, 128
          %564 = vxpose.xlu0.b32.cont [8/16] 0.0, 128
          %565 = vxpose.xlu0.b32.cont [9/16] 0.0, 128
          %566 = vxpose.xlu0.b32.cont [10/16] 0.0, 128
          %567 = vxpose.xlu0.b32.cont [11/16] 0.0, 128
          %568 = vxpose.xlu0.b32.cont [12/16] 0.0, 128
          %569 = vxpose.xlu0.b32.cont [13/16] 0.0, 128
          %570 = vxpose.xlu0.b32.cont [14/16] 0.0, 128
          %571 = vxpose.xlu0.b32.cont [15/16] 0.0, 128
          %572 = vxpose.xlu0.b32.end [16/16] 0.0, 128
          %v573 = vpop.trf.xlu0
          %v574 = vpop.trf.xlu0
          %v575 = vpop.trf.xlu0
          %v576 = vpop.trf.xlu0
          %v577 = vpop.trf.xlu0
          %v578 = vpop.trf.xlu0
          %v579 = vpop.trf.xlu0
          %v580 = vpop.trf.xlu0
          %v581 = vpop.trf.xlu0
          %v582 = vpop.trf.xlu0
          %v583 = vpop.trf.xlu0
          %v584 = vpop.trf.xlu0
          %v585 = vpop.trf.xlu0
          %v586 = vpop.trf.xlu0
          %v587 = vpop.trf.xlu0
          %v588 = vpop.trf.xlu0
          %v589 = vpack.c.bf16 %v573, %v573
          %s590 = scalar_lea.vmem [#allocation3], 12
          %591 = vst.msk [vmem:[%s590] sm:$0xf] %vm408, %v589
          %592 = vrot.lane.b32.xlu0 %v407, 40
          %v593 = vpop.permute.xlu0 %592
          %s595 = scalar_lea.vmem [#allocation4], 12
          %596 = vst.msk [vmem:[%s595] sm:$0xf] %vm408, %v593
        $region64: #{tpu_custom_call.1} parent=55 // pred_fallthru
          _
        %s597 = smul.u32 %s31, 8
        %s598 = sshra.s32 %s597, 3
        %s599 = sand.u32 %s597, 7
        %s600 = smul.addr %s598, 4
        %s601 = scalar_lea.vmem [#allocation2], %s600
        %v602 = vld [vmem:[%s601] sm:$0xf]
        %v603 = vld [vmem:[%s601 + $0x4] sm:$0xf]
        %v604 = vld [vmem:[%s601 + $0x8] sm:$0xf]
        %v605 = vld [vmem:[%s601 + $0xc] sm:$0xf]
        %v606 = vld [vmem:[#allocation3] sm:$0xf]
        %v607 = vld [vmem:[#allocation3 + $0x4] sm:$0xf]
        %v608 = vld [vmem:[#allocation3 + $0x8] sm:$0xf]
        %v609 = vld [vmem:[#allocation3 + $0xc] sm:$0xf]
        %vm610 = vcmask 64512
        %v612 = vsel %vm610, %v602, 0
        %vm614 = vcmask 1043456
        %v616 = vsel %vm614, %v606, 0
        %618 = vmatpush.bf16.msra.mxu0 0
        %619 = vmatpush.bf16.msra.mxu0 0
        %620 = vmatpush.bf16.msra.mxu0 0
        %621 = vmatpush.bf16.msra.mxu0 0
        %622 = vmatpush.bf16.msra.mxu0 0
        %623 = vmatpush.bf16.msra.mxu0 0
        %624 = vmatpush.bf16.msra.mxu0 0
        %625 = vmatpush.bf16.msra.mxu0 %v616
        %626 = vmatmul.bf16.gmra.mxu0 %v612
        %v627 = vpop.f32.mrf.mxu0
        %v628 = vadd.f32 0.0, %v627
        %v629 = vpop.f32.mrf.mxu0
        %630 = vdwg.mxu0
        %v632 = vsel %vm610, %v603, 0
        %v635 = vsel %vm614, %v607, 0
        %637 = vmatpush.bf16.msra.mxu0 0
        %638 = vmatpush.bf16.msra.mxu0 0
        %639 = vmatpush.bf16.msra.mxu0 0
        %640 = vmatpush.bf16.msra.mxu0 0
        %641 = vmatpush.bf16.msra.mxu0 0
        %642 = vmatpush.bf16.msra.mxu0 0
        %643 = vmatpush.bf16.msra.mxu0 0
        %644 = vmatpush.bf16.msra.mxu0 %v635
        %645 = vmatmul.bf16.gmra.mxu0 %v632
        %v646 = vpop.f32.mrf.mxu0
        %v647 = vadd.f32 0.0, %v646
        %v648 = vpop.f32.mrf.mxu0
        %649 = vdwg.mxu0
        %v651 = vsel %vm610, %v604, 0
        %v654 = vsel %vm614, %v608, 0
        %656 = vmatpush.bf16.msra.mxu0 0
        %657 = vmatpush.bf16.msra.mxu0 0
        %658 = vmatpush.bf16.msra.mxu0 0
        %659 = vmatpush.bf16.msra.mxu0 0
        %660 = vmatpush.bf16.msra.mxu0 0
        %661 = vmatpush.bf16.msra.mxu0 0
        %662 = vmatpush.bf16.msra.mxu0 0
        %663 = vmatpush.bf16.msra.mxu0 %v654
        %664 = vmatmul.bf16.gmra.mxu0 %v651
        %v665 = vpop.f32.mrf.mxu0
        %v666 = vadd.f32 0.0, %v665
        %v667 = vpop.f32.mrf.mxu0
        %668 = vdwg.mxu0
        %v670 = vsel %vm610, %v605, 0
        %v673 = vsel %vm614, %v609, 0
        %675 = vmatpush.bf16.msra.mxu0 0
        %676 = vmatpush.bf16.msra.mxu0 0
        %677 = vmatpush.bf16.msra.mxu0 0
        %678 = vmatpush.bf16.msra.mxu0 0
        %679 = vmatpush.bf16.msra.mxu0 0
        %680 = vmatpush.bf16.msra.mxu0 0
        %681 = vmatpush.bf16.msra.mxu0 0
        %682 = vmatpush.bf16.msra.mxu0 %v673
        %683 = vmatmul.bf16.gmra.mxu0 %v670
        %v684 = vpop.f32.mrf.mxu0
        %v685 = vadd.f32 0.0, %v684
        %v686 = vpop.f32.mrf.mxu0
        %687 = vdwg.mxu0
        %v688 = vsel %vm610, %v628, -inf
        %689 = vmax.xlane.f32.xlu0 %v688
        %v690 = vpop.xlane.xlu0 %689
        %v691 = vsel %vm610, %v647, -inf
        %692 = vmax.xlane.f32.xlu0 %v691
        %v693 = vpop.xlane.xlu0 %692
        %v694 = vsel %vm610, %v666, -inf
        %695 = vmax.xlane.f32.xlu0 %v694
        %v696 = vpop.xlane.xlu0 %695
        %v697 = vsel %vm610, %v685, -inf
        %698 = vmax.xlane.f32.xlu0 %v697
        %v699 = vpop.xlane.xlu0 %698
        %v700 = vsub.f32 %v628, %v690
        %v701 = vsub.f32 %v647, %v693
        %v702 = vsub.f32 %v666, %v696
        %v703 = vsub.f32 %v685, %v699
        %v704 = vmul.f32 %v700, 1.442695
        %v705 = vpow.pop %v704
        %v706 = vmul.f32 %v701, 1.442695
        %v707 = vpow.pop %v706
        %v708 = vmul.f32 %v702, 1.442695
        %v709 = vpow.pop %v708
        %v710 = vmul.f32 %v703, 1.442695
        %v711 = vpow.pop %v710
        %v712 = vsel %vm610, %v705, 0.0
        %713 = vadd.xlane.f32.xlu0 %v712
        %v714 = vpop.xlane.xlu0 %713
        %v715 = vsel %vm610, %v707, 0.0
        %716 = vadd.xlane.f32.xlu0 %v715
        %v717 = vpop.xlane.xlu0 %716
        %v718 = vsel %vm610, %v709, 0.0
        %719 = vadd.xlane.f32.xlu0 %v718
        %v720 = vpop.xlane.xlu0 %719
        %v721 = vsel %vm610, %v711, 0.0
        %722 = vadd.xlane.f32.xlu0 %v721
        %v723 = vpop.xlane.xlu0 %722
        %v724 = vrcp.pop %v714
        %v725 = vrcp.pop %v717
        %v726 = vrcp.pop %v720
        %v727 = vrcp.pop %v723
        %v728 = vmul.f32 %v705, %v724
        %v729 = vmul.f32 %v707, %v725
        %v730 = vmul.f32 %v709, %v726
        %v731 = vmul.f32 %v711, %v727
        %v732 = vpack.c.bf16 %v728, %v728
        %v733 = vpack.c.bf16 %v729, %v729
        %v734 = vpack.c.bf16 %v730, %v730
        %v735 = vpack.c.bf16 %v731, %v731
        %v736 = vld [vmem:[#allocation4] sm:$0xf]
        %v737 = vld [vmem:[#allocation4 + $0x4] sm:$0xf]
        %v738 = vld [vmem:[#allocation4 + $0x8] sm:$0xf]
        %v739 = vld [vmem:[#allocation4 + $0xc] sm:$0xf]
        %v741 = vsel %vm610, %v732, 0
        %v744 = vsel %vm614, %v736, 0
        %746 = vmatpush.bf16.msra.mxu0 0
        %747 = vmatpush.bf16.msra.mxu0 0
        %748 = vmatpush.bf16.msra.mxu0 0
        %749 = vmatpush.bf16.msra.mxu0 0
        %750 = vmatpush.bf16.msra.mxu0 0
        %751 = vmatpush.bf16.msra.mxu0 0
        %752 = vmatpush.bf16.msra.mxu0 0
        %753 = vmatpush.bf16.msra.mxu0 %v744
        %754 = vmatmul.bf16.gmra.mxu0 %v741
        %v755 = vpop.f32.mrf.mxu0
        %v756 = vadd.f32 0.0, %v755
        %v757 = vpop.f32.mrf.mxu0
        %758 = vdwg.mxu0
        %v760 = vsel %vm610, %v733, 0
        %v763 = vsel %vm614, %v737, 0
        %765 = vmatpush.bf16.msra.mxu0 0
        %766 = vmatpush.bf16.msra.mxu0 0
        %767 = vmatpush.bf16.msra.mxu0 0
        %768 = vmatpush.bf16.msra.mxu0 0
        %769 = vmatpush.bf16.msra.mxu0 0
        %770 = vmatpush.bf16.msra.mxu0 0
        %771 = vmatpush.bf16.msra.mxu0 0
        %772 = vmatpush.bf16.msra.mxu0 %v763
        %773 = vmatmul.bf16.gmra.mxu0 %v760
        %v774 = vpop.f32.mrf.mxu0
        %v775 = vadd.f32 0.0, %v774
        %v776 = vpop.f32.mrf.mxu0
        %777 = vdwg.mxu0
        %v779 = vsel %vm610, %v734, 0
        %v782 = vsel %vm614, %v738, 0
        %784 = vmatpush.bf16.msra.mxu0 0
        %785 = vmatpush.bf16.msra.mxu0 0
        %786 = vmatpush.bf16.msra.mxu0 0
        %787 = vmatpush.bf16.msra.mxu0 0
        %788 = vmatpush.bf16.msra.mxu0 0
        %789 = vmatpush.bf16.msra.mxu0 0
        %790 = vmatpush.bf16.msra.mxu0 0
        %791 = vmatpush.bf16.msra.mxu0 %v782
        %792 = vmatmul.bf16.gmra.mxu0 %v779
        %v793 = vpop.f32.mrf.mxu0
        %v794 = vadd.f32 0.0, %v793
        %v795 = vpop.f32.mrf.mxu0
        %796 = vdwg.mxu0
        %v798 = vsel %vm610, %v735, 0
        %v801 = vsel %vm614, %v739, 0
        %803 = vmatpush.bf16.msra.mxu0 0
        %804 = vmatpush.bf16.msra.mxu0 0
        %805 = vmatpush.bf16.msra.mxu0 0
        %806 = vmatpush.bf16.msra.mxu0 0
        %807 = vmatpush.bf16.msra.mxu0 0
        %808 = vmatpush.bf16.msra.mxu0 0
        %809 = vmatpush.bf16.msra.mxu0 0
        %810 = vmatpush.bf16.msra.mxu0 %v801
        %811 = vmatmul.bf16.gmra.mxu0 %v798
        %v812 = vpop.f32.mrf.mxu0
        %v813 = vadd.f32 0.0, %v812
        %v814 = vpop.f32.mrf.mxu0
        %815 = vdwg.mxu0
        %817 = vrot.lane.b32.xlu0 %v775, 8
        %v818 = vpop.permute.xlu0 %817
        %821 = vrot.lane.b32.xlu0 %v794, 16
        %v822 = vpop.permute.xlu0 %821
        %825 = vrot.lane.b32.xlu0 %v813, 24
        %v826 = vpop.permute.xlu0 %825
        %v828 = vsel %vm610, %v756, %v818
        %vm829 = vcmask 130048
        %v830 = vsel %vm829, %v828, %v822
        %vm831 = vcmask 195584
        %v832 = vsel %vm831, %v830, %v826
        %v833 = vpack.c.bf16 %v832, %v832
        %v834 = vld [vmem:[%s3] sm:$0xf]
        %v835 = vld [vmem:[%s3 + $0x4] sm:$0xf]
        %v836 = vld [vmem:[%s3 + $0x8] sm:$0xf]
        %v837 = vld [vmem:[%s3 + $0xc] sm:$0xf]
        %v838 = vld [vmem:[%s4] sm:$0x1]
        %v840 = vperm.slane %v838, 0
        %v846 = vunpack.c.l.b16 %v834
        %v847 = vunpack.c.l.b16 %v835
        %v848 = vunpack.c.l.b16 %v836
        %v849 = vunpack.c.l.b16 %v837
        %v850 = vpack.c.b16 %v847, %v846
        %v851 = vpack.c.b16 %v849, %v848
        %vm854 = vcmask 261120
        %v856 = vsel %vm854, %v833, 0
        %858 = vmatpush.bf16.msra.mxu0 0
        %859 = vmatpush.bf16.msra.mxu0 0
        %860 = vmatpush.bf16.msra.mxu0 0
        %861 = vmatpush.bf16.msra.mxu0 0
        %862 = vmatpush.bf16.msra.mxu0 0
        %863 = vmatpush.bf16.msra.mxu0 0
        %864 = vmatpush.bf16.msra.mxu0 %v851
        %865 = vmatpush.bf16.msra.mxu0 %v850
        %866 = vmatmul.bf16.gmra.mxu0 %v856
        %v867 = vpop.f32.mrf.mxu0
        %v868 = vadd.f32 %v840, %v867
        %v869 = vpop.f32.mrf.mxu0
        %870 = vdwg.mxu0
        %v871 = vpack.c.bf16 %v868, %v868
        %v872 = vld [vmem:[%s5] sm:$0xf]
        %v873 = vld [vmem:[%s5 + $0x4] sm:$0xf]
        %v874 = vld [vmem:[%s5 + $0x8] sm:$0xf]
        %v875 = vld [vmem:[%s5 + $0xc] sm:$0xf]
        %v876 = vld [vmem:[%s6] sm:$0x1]
        %v878 = vperm.slane %v876, 0
        %v884 = vunpack.c.l.b16 %v872
        %v885 = vunpack.c.l.b16 %v873
        %v886 = vunpack.c.l.b16 %v874
        %v887 = vunpack.c.l.b16 %v875
        %v888 = vpack.c.b16 %v885, %v884
        %v889 = vpack.c.b16 %v887, %v886
        %v893 = vsel %vm854, %v871, 0
        %895 = vmatpush.bf16.msra.mxu0 0
        %896 = vmatpush.bf16.msra.mxu0 0
        %897 = vmatpush.bf16.msra.mxu0 0
        %898 = vmatpush.bf16.msra.mxu0 0
        %899 = vmatpush.bf16.msra.mxu0 0
        %900 = vmatpush.bf16.msra.mxu0 0
        %901 = vmatpush.bf16.msra.mxu0 %v889
        %902 = vmatpush.bf16.msra.mxu0 %v888
        %903 = vmatmul.bf16.gmra.mxu0 %v893
        %v904 = vpop.f32.mrf.mxu0
        %v905 = vadd.f32 %v878, %v904
        %v906 = vpop.f32.mrf.mxu0
        %907 = vdwg.mxu0
        %v908 = vmul.f32 %v905, 0.5
        %v909 = vmul.f32 %v905, 0.70710677
        %v910 = vmul.f32 %v909, %v909
        %v911 = vmin.f32 16.0, %v910
        %v912 = vmul.f32 %v911, 2.1237322e-06
        %v913 = vadd.f32 %v912, 0.00028619796
        %v914 = vmul.f32 %v911, %v913
        %v915 = vadd.f32 %v914, 0.0036580483
        %v916 = vmul.f32 %v911, %v915
        %v917 = vadd.f32 %v916, 0.05243302
        %v918 = vmul.f32 %v911, %v917
        %v919 = vadd.f32 %v918, 0.18741608
        %v920 = vmul.f32 %v911, %v919
        %v921 = vadd.f32 %v920, 1.1283791
        %v922 = vmul.f32 %v909, %v921
        %v923 = vmul.f32 %v911, 3.8918573e-05
        %v924 = vadd.f32 %v923, 0.001143296
        %v925 = vmul.f32 %v911, %v924
        %v926 = vadd.f32 %v925, 0.014752088
        %v927 = vmul.f32 %v911, %v926
        %v928 = vadd.f32 %v927, 0.112945676
        %v929 = vmul.f32 %v911, %v928
        %v930 = vadd.f32 %v929, 0.4994258
        %v931 = vmul.f32 %v911, %v930
        %v932 = vadd.f32 %v931, 1.0
        %v933 = vrcp.pop %v932
        %v934 = vmul.f32 %v932, %v933
        %v935 = vsub.f32 1.0, %v934
        %v936 = vmul.f32 %v933, %v935
        %v937 = vadd.f32 %v933, %v936
        %vm938 = vweird.f32 %v932
        %vm939 = vweird.f32 %v933
        %vm940 = vmor %vm938, %vm939
        %v941 = vsel %vm940, %v933, %v937
        %v942 = vand.u32 2147483647, %v932
        %vm943 = vcmp.eq.f32.partialorder %v942, 8.507059e+37
        %v944 = vand.u32 %v932, 2147483648
        %v945 = vor.u32 1.1754944e-38, %v944
        %v946 = vsel %vm943, %v945, %v941
        %v947 = vmul.f32 %v922, %v946
        %v948 = vmin.f32 %v947, 1.0
        %v949 = vmax.f32 %v948, -1.0
        %v950 = vadd.f32 %v949, 1.0
        %v951 = vmul.f32 %v908, %v950
        %v952 = vpack.c.bf16 %v951, %v951
        %v953 = vld [vmem:[%s7] sm:$0xf]
        %v954 = vld [vmem:[%s7 + $0x4] sm:$0xf]
        %v955 = vld [vmem:[%s7 + $0x8] sm:$0xf]
        %v956 = vld [vmem:[%s7 + $0xc] sm:$0xf]
        %v957 = vld [vmem:[%s7 + $0x10] sm:$0xf]
        %v958 = vld [vmem:[%s7 + $0x14] sm:$0xf]
        %v959 = vld [vmem:[%s7 + $0x18] sm:$0xf]
        %v960 = vld [vmem:[%s7 + $0x1c] sm:$0xf]
        %v961 = vld [vmem:[%s8] sm:$0x1]
        %v963 = vperm.slane %v961, 0
        %v973 = vunpack.c.l.b16 %v953
        %v974 = vunpack.c.l.b16 %v954
        %v975 = vunpack.c.l.b16 %v955
        %v976 = vunpack.c.l.b16 %v956
        %v977 = vunpack.c.l.b16 %v957
        %v978 = vunpack.c.l.b16 %v958
        %v979 = vunpack.c.l.b16 %v959
        %v980 = vunpack.c.l.b16 %v960
        %v981 = vpack.c.b16 %v974, %v973
        %v982 = vpack.c.b16 %v976, %v975
        %v983 = vpack.c.b16 %v978, %v977
        %v984 = vpack.c.b16 %v980, %v979
        %vm989 = vcmask 523264
        %v991 = vsel %vm989, %v952, 0
        %993 = vmatpush.bf16.msra.mxu0 0
        %994 = vmatpush.bf16.msra.mxu0 0
        %995 = vmatpush.bf16.msra.mxu0 0
        %996 = vmatpush.bf16.msra.mxu0 0
        %997 = vmatpush.bf16.msra.mxu0 %v984
        %998 = vmatpush.bf16.msra.mxu0 %v983
        %999 = vmatpush.bf16.msra.mxu0 %v982
        %1000 = vmatpush.bf16.msra.mxu0 %v981
        %1001 = vmatmul.bf16.gmra.mxu0 %v991
        %v1002 = vpop.f32.mrf.mxu0
        %v1003 = vadd.f32 %v963, %v1002
        %v1004 = vpop.f32.mrf.mxu0
        %1005 = vdwg.mxu0
        %1006 = vst.msk [vmem:[%s363] sm:$0xff] %vm854, %v1003
        %s1007 = sand.u32 %s242, 1
        %s1008 = scalar_lea.sflag [#allocation7], %s1007
        %s1009 = sand.u32 %s242, 1
        %s1010 = smul.addr %s1009, 8
        %s1011 = scalar_lea.vmem [#allocation8], %s1010
        // Predicated region
        $region65: #{tpu_custom_call.1} parent=55 // pred_check
          %p1012 = pneg %p252
        $region66: #{tpu_custom_call.1} parent=55 // pred_check_branch
          %1014 = sbr.rel (%p1012) target = $region68
        $region67: #{tpu_custom_call.1} parent=55 // pred_region
          %1016 = vsyncadd %s1008, 0
          %s1017 = sadd.s32 %s31, %s30
          %s1018 = smul.addr %s1017, 8
          %s1019 = scalar_lea.hbm %s9, %s1018
          %s1021 = sshll.u32 %s1011, 4
          %s1022 = int_to_ptr.vmem [resolvable:$true] %s1021
          %s1023 = sshll.u32 %s1019, 4
          %s1024 = int_to_ptr.hbm [resolvable:$true] %s1023
          %1026 = dma.vmem_to_hbm [thread:$0]  %s1022, 128, %s1024, %s1008
        $region68: #{tpu_custom_call.1} parent=55 // pred_fallthru
          _
      $region56: #{tpu_custom_call.1} parent=5 // pred_fallthru
        _
      %p1027 = scmp.le.s32.totalorder 2, %s21
      // Predicated region
      $region69: #{tpu_custom_call.1} parent=5 // pred_check
        %p1028 = pneg %p1027
      $region70: #{tpu_custom_call.1} parent=5 // pred_check_branch
        %1030 = sbr.rel (%p1028) target = $region72
      $region71: #{tpu_custom_call.1} parent=5 // pred_region
        %s1031 = ssub.s32 %s21, 2
        // Predicated region
        $region73: #{tpu_custom_call.1} parent=71 // pred_check
          %p1032 = pneg %p258
        $region74: #{tpu_custom_call.1} parent=71 // pred_check_branch
          %1034 = sbr.rel (%p1032) target = $region76
        $region75: #{tpu_custom_call.1} parent=71 // pred_region
          %s1035 = sand.u32 %s243, 1
          %s1036 = scalar_lea.sflag [#allocation7], %s1035
          %s1037 = sand.u32 %s243, 1
          %s1038 = smul.addr %s1037, 8
          %s1039 = scalar_lea.vmem [#allocation8], %s1038
          %1041 = dma.done %s1036, 128
        $region76: #{tpu_custom_call.1} parent=71 // pred_fallthru
          _
      $region72: #{tpu_custom_call.1} parent=5 // pred_fallthru
        _
    $region6: #{tpu_custom_call.1} parent=1 // loop_footer
      %s25 = sadd.s32 1, %s21
    $region7: #{tpu_custom_call.1} parent=1 // loop_footer_branch
      %20 = sbr.rel target = $region3
    $region8: #{tpu_custom_call.1} parent=1 // loop_exit
      _
    %1042 = vsyncpa [#allocation6], 1
    %s1043 = scalar_lea.sflag [#allocation6], 1
    %1044 = vsyncpa %s1043, 1
    %1045 = vsyncpa [#allocation7], 1
    %s1046 = scalar_lea.sflag [#allocation7], 1
    %1047 = vsyncpa %s1046, 1

// kernel: tpu_custom_call.1
$region0: #{tpu_custom_call.1}
  #allocation0 [shape = 'u32[]', space=smem, size = 0x4, offset = 0x4, fixed_abs, tag = 'smem constant byte address 0x4 - core index']
  #allocation1 [shape = 'u32[72,128]{1,0:T(1,128)}', space=vmem, size = 0x9000, scoped, tag = 'internal scratch']
  #allocation2 [shape = 'bf16[4,8,8]{2,1,0:T(8,128)(2,1)}', space=vmem, size = 0x2000, scoped, tag = 'scratch operand']
  #allocation3 [shape = 'bf16[4,8,8]{2,1,0:T(8,128)(2,1)}', space=vmem, size = 0x2000, scoped, tag = 'scratch operand']
  #allocation4 [shape = 'bf16[4,8,8]{2,1,0:T(8,128)(2,1)}', space=vmem, size = 0x2000, scoped, tag = 'scratch operand']
  %s0 = inlined_call_operand.hbm [shape: bf16[2,8,32], index: 0, kind: input, shape index: {}]
  %s1 = inlined_call_operand.vmem [shape: bf16[32,96], index: 1, kind: input, shape index: {}]
  %s2 = inlined_call_operand.vmem [shape: f32[1,96], index: 2, kind: input, shape index: {}]
  %s3 = inlined_call_operand.vmem [shape: bf16[32,32], index: 3, kind: input, shape index: {}]
  %s4 = inlined_call_operand.vmem [shape: f32[1,32], index: 4, kind: input, shape index: {}]
  %s5 = inlined_call_operand.vmem [shape: bf16[32,64], index: 5, kind: input, shape index: {}]
  %s6 = inlined_call_operand.vmem [shape: f32[1,64], index: 6, kind: input, shape index: {}]
  %s7 = inlined_call_operand.vmem [shape: bf16[64,32], index: 7, kind: input, shape index: {}]
  %s8 = inlined_call_operand.vmem [shape: f32[1,32], index: 8, kind: input, shape index: {}]
  %s9 = inlined_call_operand.hbm [shape: f32[2,8,32], index: 9, kind: output, shape index: {}]
  %s10 = sld [smem:[#allocation0]]
  $region77: #{tpu_custom_call.1} parent=0
    _
  %s12 = ssub.s32 1, %s10
  %s13 = scalar_select 0, %s12, %s10
  $region1: #{tpu_custom_call.1} parent=0
    #allocation5 [shape = 'u8[4096]{0}', space=vmem, size = 0x1000, scoped, tag = 'input window, operand 0']
    #allocation6 [shape = 's32[2]{0}', space=sflag, size = 0x8, scoped, tag = 'scoped memory for tpu_custom_call.1']
    #allocation7 [shape = 's32[2]{0}', space=sflag, size = 0x8, scoped, tag = 'scoped memory for tpu_custom_call.1']
    #allocation8 [shape = 'u8[8192]{0}', space=vmem, size = 0x2000, scoped, tag = 'output window, operand 0']
    %14 = vsyncpa [#allocation6], 0
    %s15 = scalar_lea.sflag [#allocation6], 1
    %16 = vsyncpa %s15, 0
    %17 = vsyncpa [#allocation7], 0
    %s18 = scalar_lea.sflag [#allocation7], 1
    %19 = vsyncpa %s18, 0
    loop: start=0, step=1, limit=4
    $region2: #{tpu_custom_call.1} parent=1 // loop_pre_header
      _
    $region3: #{tpu_custom_call.1} parent=1 // loop_header
      %s21 = sphi 0, %s25
      %p22 = scmp.ge.s32.totalorder %s21, 4
      %s28 = sphi 0, %s40
      %s29 = sphi 0, %s36
      %s30 = sphi 0, %s28
      %s31 = sphi 0, %s29
      %s32 = sphi 0, %s30
      %s33 = sphi 0, %s31
      %s43 = sphi 0, %s45
      %s46 = sphi 0, %s43
      %s47 = sphi 0, %s46
      %s63 = sphi 0, %s47
      %s67 = sphi 0, %s67
      %s69 = sphi 0, %s67
      %s70 = sphi 0, %s69
      %s84 = sphi 0, %s70
      %s88 = sphi 0, %s88
      %s90 = sphi 0, %s88
      %s91 = sphi 0, %s90
      %s105 = sphi 0, %s91
      %s109 = sphi 0, %s109
      %s111 = sphi 0, %s109
      %s112 = sphi 0, %s111
      %s126 = sphi 0, %s112
      %s130 = sphi 0, %s130
      %s132 = sphi 0, %s130
      %s133 = sphi 0, %s132
      %s147 = sphi 0, %s133
      %s151 = sphi 0, %s151
      %s153 = sphi 0, %s151
      %s154 = sphi 0, %s153
      %s168 = sphi 0, %s154
      %s172 = sphi 0, %s172
      %s174 = sphi 0, %s172
      %s175 = sphi 0, %s174
      %s189 = sphi 0, %s175
      %s193 = sphi 0, %s193
      %s195 = sphi 0, %s193
      %s196 = sphi 0, %s195
      %s210 = sphi 0, %s196
      %s214 = sphi 0, %s214
      %s216 = sphi 0, %s214
      %s217 = sphi 0, %s216
      %s231 = sphi 0, %s217
      %s239 = sphi 0, %s241
      %s242 = sphi 0, %s239
      %s243 = sphi 0, %s242
      %s259 = sphi 0, %s243
    $region4: #{tpu_custom_call.1} parent=1 // loop_header_branch
      %24 = sbr.rel (%p22) target = $region8
    $region5: #{tpu_custom_call.1} parent=1 // loop_body
      %s26 = ssub.s32 %s21, 1
      %s27 = ssub.s32 %s21, 2
      %s34 = sadd.s32 1, %s29
      %p35 = scmp.ge.s32.totalorder %s34, 1
      %s36 = scalar_select %p35, 0, %s34
      %s37 = sadd.s32 1, %s28
      %s38 = scalar_select %p35, %s37, %s28
      %p39 = scmp.ge.s32.totalorder %s38, 2
      %s40 = scalar_select %p39, 0, %s38
      %s41 = ssub.s32 %s28, %s40
      %p42 = scmp.eq.s32.totalorder %s41, 0
      %s44 = sadd.s32 %s43, 1
      %s45 = scalar_select %p42, %s43, %s44
      %p48 = pneg %p42
      %p49 = scmp.eq.s32.totalorder %s21, 1
      %p50 = por %p48, %p49
      %p51 = scmp.ne.s32.totalorder %s43, %s46
      %p52 = scmp.eq.s32.totalorder %s21, 0
      %p53 = por %p51, %p52
      %p54 = scmp.ne.s32.totalorder %s43, %s46
      %p55 = scmp.eq.s32.totalorder %s26, 1
      %p56 = por %p54, %p55
      %p57 = scmp.ne.s32.totalorder %s46, %s47
      %p58 = scmp.eq.s32.totalorder %s26, 0
      %p59 = por %p57, %p58
      %p60 = scmp.ne.s32.totalorder %s46, %s47
      %p61 = scmp.eq.s32.totalorder %s27, 1
      %p62 = por %p60, %p61
      %p64 = scmp.ne.s32.totalorder %s47, %s63
      %p65 = scmp.eq.s32.totalorder %s27, 0
      %p66 = por %p64, %p65
      %s68 = sadd.s32 %s67, 1
      %p71 = scmp.eq.s32.totalorder %s21, 1
      %p72 = scmp.ne.s32.totalorder %s67, %s69
      %p73 = scmp.eq.s32.totalorder %s21, 0
      %p74 = por %p72, %p73
      %p75 = scmp.ne.s32.totalorder %s67, %s69
      %p76 = scmp.eq.s32.totalorder %s26, 1
      %p77 = por %p75, %p76
      %p78 = scmp.ne.s32.totalorder %s69, %s70
      %p79 = scmp.eq.s32.totalorder %s26, 0
      %p80 = por %p78, %p79
      %p81 = scmp.ne.s32.totalorder %s69, %s70
      %p82 = scmp.eq.s32.totalorder %s27, 1
      %p83 = por %p81, %p82
      %p85 = scmp.ne.s32.totalorder %s70, %s84
      %p86 = scmp.eq.s32.totalorder %s27, 0
      %p87 = por %p85, %p86
      %s89 = sadd.s32 %s88, 1
      %p92 = scmp.eq.s32.totalorder %s21, 1
      %p93 = scmp.ne.s32.totalorder %s88, %s90
      %p94 = scmp.eq.s32.totalorder %s21, 0
      %p95 = por %p93, %p94
      %p96 = scmp.ne.s32.totalorder %s88, %s90
      %p97 = scmp.eq.s32.totalorder %s26, 1
      %p98 = por %p96, %p97
      %p99 = scmp.ne.s32.totalorder %s90, %s91
      %p100 = scmp.eq.s32.totalorder %s26, 0
      %p101 = por %p99, %p100
      %p102 = scmp.ne.s32.totalorder %s90, %s91
      %p103 = scmp.eq.s32.totalorder %s27, 1
      %p104 = por %p102, %p103
      %p106 = scmp.ne.s32.totalorder %s91, %s105
      %p107 = scmp.eq.s32.totalorder %s27, 0
      %p108 = por %p106, %p107
      %s110 = sadd.s32 %s109, 1
      %p113 = scmp.eq.s32.totalorder %s21, 1
      %p114 = scmp.ne.s32.totalorder %s109, %s111
      %p115 = scmp.eq.s32.totalorder %s21, 0
      %p116 = por %p114, %p115
      %p117 = scmp.ne.s32.totalorder %s109, %s111
      %p118 = scmp.eq.s32.totalorder %s26, 1
      %p119 = por %p117, %p118
      %p120 = scmp.ne.s32.totalorder %s111, %s112
      %p121 = scmp.eq.s32.totalorder %s26, 0
      %p122 = por %p120, %p121
      %p123 = scmp.ne.s32.totalorder %s111, %s112
      %p124 = scmp.eq.s32.totalorder %s27, 1
      %p125 = por %p123, %p124
      %p127 = scmp.ne.s32.totalorder %s112, %s126
      %p128 = scmp.eq.s32.totalorder %s27, 0
      %p129 = por %p127, %p128
      %s131 = sadd.s32 %s130, 1
      %p134 = scmp.eq.s32.totalorder %s21, 1
      %p135 = scmp.ne.s32.totalorder %s130, %s132
      %p136 = scmp.eq.s32.totalorder %s21, 0
      %p137 = por %p135, %p136
      %p138 = scmp.ne.s32.totalorder %s130, %s132
      %p139 = scmp.eq.s32.totalorder %s26, 1
      %p140 = por %p138, %p139
      %p141 = scmp.ne.s32.totalorder %s132, %s133
      %p142 = scmp.eq.s32.totalorder %s26, 0
      %p143 = por %p141, %p142
      %p144 = scmp.ne.s32.totalorder %s132, %s133
      %p145 = scmp.eq.s32.totalorder %s27, 1
      %p146 = por %p144, %p145
      %p148 = scmp.ne.s32.totalorder %s133, %s147
      %p149 = scmp.eq.s32.totalorder %s27, 0
      %p150 = por %p148, %p149
      %s152 = sadd.s32 %s151, 1
      %p155 = scmp.eq.s32.totalorder %s21, 1
      %p156 = scmp.ne.s32.totalorder %s151, %s153
      %p157 = scmp.eq.s32.totalorder %s21, 0
      %p158 = por %p156, %p157
      %p159 = scmp.ne.s32.totalorder %s151, %s153
      %p160 = scmp.eq.s32.totalorder %s26, 1
      %p161 = por %p159, %p160
      %p162 = scmp.ne.s32.totalorder %s153, %s154
      %p163 = scmp.eq.s32.totalorder %s26, 0
      %p164 = por %p162, %p163
      %p165 = scmp.ne.s32.totalorder %s153, %s154
      %p166 = scmp.eq.s32.totalorder %s27, 1
      %p167 = por %p165, %p166
      %p169 = scmp.ne.s32.totalorder %s154, %s168
      %p170 = scmp.eq.s32.totalorder %s27, 0
      %p171 = por %p169, %p170
      %s173 = sadd.s32 %s172, 1
      %p176 = scmp.eq.s32.totalorder %s21, 1
      %p177 = scmp.ne.s32.totalorder %s172, %s174
      %p178 = scmp.eq.s32.totalorder %s21, 0
      %p179 = por %p177, %p178
      %p180 = scmp.ne.s32.totalorder %s172, %s174
      %p181 = scmp.eq.s32.totalorder %s26, 1
      %p182 = por %p180, %p181
      %p183 = scmp.ne.s32.totalorder %s174, %s175
      %p184 = scmp.eq.s32.totalorder %s26, 0
      %p185 = por %p183, %p184
      %p186 = scmp.ne.s32.totalorder %s174, %s175
      %p187 = scmp.eq.s32.totalorder %s27, 1
      %p188 = por %p186, %p187
      %p190 = scmp.ne.s32.totalorder %s175, %s189
      %p191 = scmp.eq.s32.totalorder %s27, 0
      %p192 = por %p190, %p191
      %s194 = sadd.s32 %s193, 1
      %p197 = scmp.eq.s32.totalorder %s21, 1
      %p198 = scmp.ne.s32.totalorder %s193, %s195
      %p199 = scmp.eq.s32.totalorder %s21, 0
      %p200 = por %p198, %p199
      %p201 = scmp.ne.s32.totalorder %s193, %s195
      %p202 = scmp.eq.s32.totalorder %s26, 1
      %p203 = por %p201, %p202
      %p204 = scmp.ne.s32.totalorder %s195, %s196
      %p205 = scmp.eq.s32.totalorder %s26, 0
      %p206 = por %p204, %p205
      %p207 = scmp.ne.s32.totalorder %s195, %s196
      %p208 = scmp.eq.s32.totalorder %s27, 1
      %p209 = por %p207, %p208
      %p211 = scmp.ne.s32.totalorder %s196, %s210
      %p212 = scmp.eq.s32.totalorder %s27, 0
      %p213 = por %p211, %p212
      %s215 = sadd.s32 %s214, 1
      %p218 = scmp.eq.s32.totalorder %s21, 1
      %p219 = scmp.ne.s32.totalorder %s214, %s216
      %p220 = scmp.eq.s32.totalorder %s21, 0
      %p221 = por %p219, %p220
      %p222 = scmp.ne.s32.totalorder %s214, %s216
      %p223 = scmp.eq.s32.totalorder %s26, 1
      %p224 = por %p222, %p223
      %p225 = scmp.ne.s32.totalorder %s216, %s217
      %p226 = scmp.eq.s32.totalorder %s26, 0
      %p227 = por %p225, %p226
      %p228 = scmp.ne.s32.totalorder %s216, %s217
      %p229 = scmp.eq.s32.totalorder %s27, 1
      %p230 = por %p228, %p229
      %p232 = scmp.ne.s32.totalorder %s217, %s231
      %p233 = scmp.eq.s32.totalorder %s27, 0
      %p234 = por %p232, %p233
      %s235 = ssub.s32 %s28, %s40
      %s236 = ssub.s32 %s29, %s36
      %s237 = sor.u32 %s235, %s236
      %p238 = scmp.eq.s32.totalorder %s237, 0
      %s240 = sadd.s32 %s239, 1
      %s241 = scalar_select %p238, %s239, %s240
      %p244 = pneg %p238
      %p245 = scmp.eq.s32.totalorder %s21, 1
      %p246 = por %p244, %p245
      %p247 = scmp.ne.s32.totalorder %s239, %s242
      %p248 = scmp.eq.s32.totalorder %s21, 0
      %p249 = por %p247, %p248
      %p250 = scmp.ne.s32.totalorder %s239, %s242
      %p251 = scmp.eq.s32.totalorder %s26, 1
      %p252 = por %p250, %p251
      %p253 = scmp.ne.s32.totalorder %s242, %s243
      %p254 = scmp.eq.s32.totalorder %s26, 0
      %p255 = por %p253, %p254
      %p256 = scmp.ne.s32.totalorder %s242, %s243
      %p257 = scmp.eq.s32.totalorder %s27, 1
      %p258 = por %p256, %p257
      %p260 = scmp.ne.s32.totalorder %s243, %s259
      %p261 = scmp.eq.s32.totalorder %s27, 0
      %p262 = por %p260, %p261
      %p263 = scmp.le.s32.totalorder 1, %s21
      %p264 = scmp.lt.s32.totalorder %s21, 3
      %p265 = pnand %p263, %p264
      %p266 = pneg %p265
      // Predicated region
      $region9: #{tpu_custom_call.1} parent=5 // pred_check
        _
      $region10: #{tpu_custom_call.1} parent=5 // pred_check_branch
        %268 = sbr.rel (%p265) target = $region12
      $region11: #{tpu_custom_call.1} parent=5 // pred_region
        %s269 = ssub.s32 %s21, 1
        // Predicated region
        $region13: #{tpu_custom_call.1} parent=11 // pred_check
          %p270 = pneg %p80
        $region14: #{tpu_custom_call.1} parent=11 // pred_check_branch
          %272 = sbr.rel (%p270) target = $region16
        $region15: #{tpu_custom_call.1} parent=11 // pred_region
          _
        $region16: #{tpu_custom_call.1} parent=11 // pred_fallthru
          _
        // Predicated region
        $region17: #{tpu_custom_call.1} parent=11 // pred_check
          %p273 = pneg %p101
        $region18: #{tpu_custom_call.1} parent=11 // pred_check_branch
          %275 = sbr.rel (%p273) target = $region20
        $region19: #{tpu_custom_call.1} parent=11 // pred_region
          _
        $region20: #{tpu_custom_call.1} parent=11 // pred_fallthru
          _
        // Predicated region
        $region21: #{tpu_custom_call.1} parent=11 // pred_check
          %p276 = pneg %p122
        $region22: #{tpu_custom_call.1} parent=11 // pred_check_branch
          %278 = sbr.rel (%p276) target = $region24
        $region23: #{tpu_custom_call.1} parent=11 // pred_region
          _
        $region24: #{tpu_custom_call.1} parent=11 // pred_fallthru
          _
        // Predicated region
        $region25: #{tpu_custom_call.1} parent=11 // pred_check
          %p279 = pneg %p143
        $region26: #{tpu_custom_call.1} parent=11 // pred_check_branch
          %281 = sbr.rel (%p279) target = $region28
        $region27: #{tpu_custom_call.1} parent=11 // pred_region
          _
        $region28: #{tpu_custom_call.1} parent=11 // pred_fallthru
          _
        // Predicated region
        $region29: #{tpu_custom_call.1} parent=11 // pred_check
          %p282 = pneg %p164
        $region30: #{tpu_custom_call.1} parent=11 // pred_check_branch
          %284 = sbr.rel (%p282) target = $region32
        $region31: #{tpu_custom_call.1} parent=11 // pred_region
          _
        $region32: #{tpu_custom_call.1} parent=11 // pred_fallthru
          _
        // Predicated region
        $region33: #{tpu_custom_call.1} parent=11 // pred_check
          %p285 = pneg %p185
        $region34: #{tpu_custom_call.1} parent=11 // pred_check_branch
          %287 = sbr.rel (%p285) target = $region36
        $region35: #{tpu_custom_call.1} parent=11 // pred_region
          _
        $region36: #{tpu_custom_call.1} parent=11 // pred_fallthru
          _
        // Predicated region
        $region37: #{tpu_custom_call.1} parent=11 // pred_check
          %p288 = pneg %p206
        $region38: #{tpu_custom_call.1} parent=11 // pred_check_branch
          %290 = sbr.rel (%p288) target = $region40
        $region39: #{tpu_custom_call.1} parent=11 // pred_region
          _
        $region40: #{tpu_custom_call.1} parent=11 // pred_fallthru
          _
        // Predicated region
        $region41: #{tpu_custom_call.1} parent=11 // pred_check
          %p291 = pneg %p227
        $region42: #{tpu_custom_call.1} parent=11 // pred_check_branch
          %293 = sbr.rel (%p291) target = $region44
        $region43: #{tpu_custom_call.1} parent=11 // pred_region
          _
        $region44: #{tpu_custom_call.1} parent=11 // pred_fallthru
          _
      $region12: #{tpu_custom_call.1} parent=5 // pred_fallthru
        _
      %p294 = scmp.lt.s32.totalorder %s21, 2
      // Predicated region
      $region45: #{tpu_custom_call.1} parent=5 // pred_check
        %p295 = pneg %p294
      $region46: #{tpu_custom_call.1} parent=5 // pred_check_branch
        %297 = sbr.rel (%p295) target = $region48
      $region47: #{tpu_custom_call.1} parent=5 // pred_region
        // Predicated region
        $region49: #{tpu_custom_call.1} parent=47 // pred_check
          %p298 = pneg %p53
        $region50: #{tpu_custom_call.1} parent=47 // pred_check_branch
          %300 = sbr.rel (%p298) target = $region52
        $region51: #{tpu_custom_call.1} parent=47 // pred_region
          %s301 = sand.u32 %s43, 1
          %s302 = scalar_lea.sflag [#allocation6], %s301
          %s303 = sand.u32 %s43, 1
          %s304 = smul.addr %s303, 4
          %s305 = scalar_lea.vmem [#allocation5], %s304
          %307 = vsyncadd %s302, 0
          %s308 = smul.addr %s28, 4
          %s309 = scalar_lea.hbm %s0, %s308
          %s311 = sshll.u32 %s309, 4
          %s312 = int_to_ptr.hbm [resolvable:$true] %s311
          %s313 = sshll.u32 %s305, 4
          %s314 = int_to_ptr.vmem [resolvable:$true] %s313
          %316 = dma.hbm_to_vmem [thread:$0]  %s312, 64, %s314, %s302
        $region52: #{tpu_custom_call.1} parent=47 // pred_fallthru
          _
      $region48: #{tpu_custom_call.1} parent=5 // pred_fallthru
        _
      %p317 = scmp.le.s32.totalorder 1, %s21
      %p318 = scmp.lt.s32.totalorder %s21, 3
      %p319 = pnand %p317, %p318
      %p320 = pneg %p319
      // Predicated region
      $region53: #{tpu_custom_call.1} parent=5 // pred_check
        _
      $region54: #{tpu_custom_call.1} parent=5 // pred_check_branch
        %322 = sbr.rel (%p319) target = $region56
      $region55: #{tpu_custom_call.1} parent=5 // pred_region
        %s323 = ssub.s32 %s21, 1
        %s324 = sand.u32 %s46, 1
        %s325 = scalar_lea.sflag [#allocation6], %s324
        %s326 = sand.u32 %s46, 1
        %s327 = smul.addr %s326, 4
        %s328 = scalar_lea.vmem [#allocation5], %s327
        // Predicated region
        $region57: #{tpu_custom_call.1} parent=55 // pred_check
          %p329 = pneg %p59
        $region58: #{tpu_custom_call.1} parent=55 // pred_check_branch
          %331 = sbr.rel (%p329) target = $region60
        $region59: #{tpu_custom_call.1} parent=55 // pred_region
          %333 = dma.done %s325, 64
        $region60: #{tpu_custom_call.1} parent=55 // pred_fallthru
          _
        %s334 = sand.u32 %s46, 1
        %s335 = scalar_lea.sflag [#allocation6], %s334
        %s336 = sand.u32 %s46, 1
        %s337 = smul.addr %s336, 4
        %s338 = scalar_lea.vmem [#allocation5], %s337
        %p339 = pneg %p59
        %p340 = pneg %p56
        %p341 = pneg %p80
        %p342 = pneg %p77
        %p343 = pneg %p101
        %p344 = pneg %p98
        %p345 = pneg %p122
        %p346 = pneg %p119
        %p347 = pneg %p143
        %p348 = pneg %p140
        %p349 = pneg %p164
        %p350 = pneg %p161
        %p351 = pneg %p185
        %p352 = pneg %p182
        %p353 = pneg %p206
        %p354 = pneg %p203
        %p355 = pneg %p227
        %p356 = pneg %p224
        %p357 = pneg %p255
        %p358 = pneg %p252
        %s359 = sand.u32 %s242, 1
        %s360 = scalar_lea.sflag [#allocation7], %s359
        %s361 = sand.u32 %s242, 1
        %s362 = smul.addr %s361, 8
        %s363 = scalar_lea.vmem [#allocation8], %s362
        %p365 = scmp.eq.s32.totalorder %s31, 0
        // Predicated region
        $region61: #{tpu_custom_call.1} parent=55 // pred_check
          %p366 = pneg %p365
        $region62: #{tpu_custom_call.1} parent=55 // pred_check_branch
          %368 = sbr.rel (%p366) target = $region64
        $region63: #{tpu_custom_call.1} parent=55 // pred_region
          %v369 = vld [vmem:[%s328] sm:$0xf]
          %v370 = vld [vmem:[%s1] sm:$0xf]
          %v371 = vld [vmem:[%s1 + $0x4] sm:$0xf]
          %v372 = vld [vmem:[%s1 + $0x8] sm:$0xf]
          %v373 = vld [vmem:[%s1 + $0xc] sm:$0xf]
          %v374 = vld [vmem:[%s2] sm:$0x1]
          %v376 = vperm.slane %v374, 0
          %v382 = vunpack.c.l.b16 %v370
          %v383 = vunpack.c.l.b16 %v371
          %v384 = vunpack.c.l.b16 %v372
          %v385 = vunpack.c.l.b16 %v373
          %v386 = vpack.c.b16 %v383, %v382
          %v387 = vpack.c.b16 %v385, %v384
          %vm390 = vcmask 261120
          %v392 = vsel %vm390, %v369, 0
          %394 = vmatpush.bf16.msra.mxu0 0
          %395 = vmatpush.bf16.msra.mxu0 0
          %396 = vmatpush.bf16.msra.mxu0 0
          %397 = vmatpush.bf16.msra.mxu0 0
          %398 = vmatpush.bf16.msra.mxu0 0
          %399 = vmatpush.bf16.msra.mxu0 0
          %400 = vmatpush.bf16.msra.mxu0 %v387
          %401 = vmatpush.bf16.msra.mxu0 %v386
          %402 = vmatmul.bf16.gmra.mxu0 %v392
          %v403 = vpop.f32.mrf.mxu0
          %v404 = vadd.f32 %v376, %v403
          %v405 = vpop.f32.mrf.mxu0
          %406 = vdwg.mxu0
          %v407 = vpack.c.bf16 %v404, %v404
          %vm408 = vcmask 60416
          %409 = vst.msk [vmem:[#allocation2] sm:$0xf] %vm408, %v407
          %411 = vrot.lane.b32.xlu0 %v404, 96
          %v412 = vpop.permute.xlu0 %411
          %414 = vxpose.xlu0.b32.start [1/16] %v412, 128
          %415 = vxpose.xlu0.b32.cont [2/16] 0.0, 128
          %416 = vxpose.xlu0.b32.cont [3/16] 0.0, 128
          %417 = vxpose.xlu0.b32.cont [4/16] 0.0, 128
          %418 = vxpose.xlu0.b32.cont [5/16] 0.0, 128
          %419 = vxpose.xlu0.b32.cont [6/16] 0.0, 128
          %420 = vxpose.xlu0.b32.cont [7/16] 0.0, 128
          %421 = vxpose.xlu0.b32.cont [8/16] 0.0, 128
          %422 = vxpose.xlu0.b32.cont [9/16] 0.0, 128
          %423 = vxpose.xlu0.b32.cont [10/16] 0.0, 128
          %424 = vxpose.xlu0.b32.cont [11/16] 0.0, 128
          %425 = vxpose.xlu0.b32.cont [12/16] 0.0, 128
          %426 = vxpose.xlu0.b32.cont [13/16] 0.0, 128
          %427 = vxpose.xlu0.b32.cont [14/16] 0.0, 128
          %428 = vxpose.xlu0.b32.cont [15/16] 0.0, 128
          %429 = vxpose.xlu0.b32.end [16/16] 0.0, 128
          %v430 = vpop.trf.xlu0
          %v431 = vpop.trf.xlu0
          %v432 = vpop.trf.xlu0
          %v433 = vpop.trf.xlu0
          %v434 = vpop.trf.xlu0
          %v435 = vpop.trf.xlu0
          %v436 = vpop.trf.xlu0
          %v437 = vpop.trf.xlu0
          %v438 = vpop.trf.xlu0
          %v439 = vpop.trf.xlu0
          %v440 = vpop.trf.xlu0
          %v441 = vpop.trf.xlu0
          %v442 = vpop.trf.xlu0
          %v443 = vpop.trf.xlu0
          %v444 = vpop.trf.xlu0
          %v445 = vpop.trf.xlu0
          %v446 = vpack.c.bf16 %v430, %v430
          %447 = vst.msk [vmem:[#allocation3] sm:$0xf] %vm408, %v446
          %449 = vrot.lane.b32.xlu0 %v407, 64
          %v450 = vpop.permute.xlu0 %449
          %452 = vst.msk [vmem:[#allocation4] sm:$0xf] %vm408, %v450
          %453 = vrot.lane.b32.xlu0 %v407, 120
          %v454 = vpop.permute.xlu0 %453
          %s456 = scalar_lea.vmem [#allocation2], 4
          %457 = vst.msk [vmem:[%s456] sm:$0xf] %vm408, %v454
          %458 = vrot.lane.b32.xlu0 %v404, 88
          %v459 = vpop.permute.xlu0 %458
          %461 = vxpose.xlu0.b32.start [1/16] %v459, 128
          %462 = vxpose.xlu0.b32.cont [2/16] 0.0, 128
          %463 = vxpose.xlu0.b32.cont [3/16] 0.0, 128
          %464 = vxpose.xlu0.b32.cont [4/16] 0.0, 128
          %465 = vxpose.xlu0.b32.cont [5/16] 0.0, 128
          %466 = vxpose.xlu0.b32.cont [6/16] 0.0, 128
          %467 = vxpose.xlu0.b32.cont [7/16] 0.0, 128
          %468 = vxpose.xlu0.b32.cont [8/16] 0.0, 128
          %469 = vxpose.xlu0.b32.cont [9/16] 0.0, 128
          %470 = vxpose.xlu0.b32.cont [10/16] 0.0, 128
          %471 = vxpose.xlu0.b32.cont [11/16] 0.0, 128
          %472 = vxpose.xlu0.b32.cont [12/16] 0.0, 128
          %473 = vxpose.xlu0.b32.cont [13/16] 0.0, 128
          %474 = vxpose.xlu0.b32.cont [14/16] 0.0, 128
          %475 = vxpose.xlu0.b32.cont [15/16] 0.0, 128
          %476 = vxpose.xlu0.b32.end [16/16] 0.0, 128
          %v477 = vpop.trf.xlu0
          %v478 = vpop.trf.xlu0
          %v479 = vpop.trf.xlu0
          %v480 = vpop.trf.xlu0
          %v481 = vpop.trf.xlu0
          %v482 = vpop.trf.xlu0
          %v483 = vpop.trf.xlu0
          %v484 = vpop.trf.xlu0
          %v485 = vpop.trf.xlu0
          %v486 = vpop.trf.xlu0
          %v487 = vpop.trf.xlu0
          %v488 = vpop.trf.xlu0
          %v489 = vpop.trf.xlu0
          %v490 = vpop.trf.xlu0
          %v491 = vpop.trf.xlu0
          %v492 = vpop.trf.xlu0
          %v493 = vpack.c.bf16 %v477, %v477
          %s494 = scalar_lea.vmem [#allocation3], 4
          %495 = vst.msk [vmem:[%s494] sm:$0xf] %vm408, %v493
          %496 = vrot.lane.b32.xlu0 %v407, 56
          %v497 = vpop.permute.xlu0 %496
          %s499 = scalar_lea.vmem [#allocation4], 4
          %500 = vst.msk [vmem:[%s499] sm:$0xf] %vm408, %v497
          %501 = vrot.lane.b32.xlu0 %v407, 112
          %v502 = vpop.permute.xlu0 %501
          %s504 = scalar_lea.vmem [#allocation2], 8
          %505 = vst.msk [vmem:[%s504] sm:$0xf] %vm408, %v502
          %506 = vrot.lane.b32.xlu0 %v404, 80
          %v507 = vpop.permute.xlu0 %506
          %509 = vxpose.xlu0.b32.start [1/16] %v507, 128
          %510 = vxpose.xlu0.b32.cont [2/16] 0.0, 128
          %511 = vxpose.xlu0.b32.cont [3/16] 0.0, 128
          %512 = vxpose.xlu0.b32.cont [4/16] 0.0, 128
          %513 = vxpose.xlu0.b32.cont [5/16] 0.0, 128
          %514 = vxpose.xlu0.b32.cont [6/16] 0.0, 128
          %515 = vxpose.xlu0.b32.cont [7/16] 0.0, 128
          %516 = vxpose.xlu0.b32.cont [8/16] 0.0, 128
          %517 = vxpose.xlu0.b32.cont [9/16] 0.0, 128
          %518 = vxpose.xlu0.b32.cont [10/16] 0.0, 128
          %519 = vxpose.xlu0.b32.cont [11/16] 0.0, 128
          %520 = vxpose.xlu0.b32.cont [12/16] 0.0, 128
          %521 = vxpose.xlu0.b32.cont [13/16] 0.0, 128
          %522 = vxpose.xlu0.b32.cont [14/16] 0.0, 128
          %523 = vxpose.xlu0.b32.cont [15/16] 0.0, 128
          %524 = vxpose.xlu0.b32.end [16/16] 0.0, 128
          %v525 = vpop.trf.xlu0
          %v526 = vpop.trf.xlu0
          %v527 = vpop.trf.xlu0
          %v528 = vpop.trf.xlu0
          %v529 = vpop.trf.xlu0
          %v530 = vpop.trf.xlu0
          %v531 = vpop.trf.xlu0
          %v532 = vpop.trf.xlu0
          %v533 = vpop.trf.xlu0
          %v534 = vpop.trf.xlu0
          %v535 = vpop.trf.xlu0
          %v536 = vpop.trf.xlu0
          %v537 = vpop.trf.xlu0
          %v538 = vpop.trf.xlu0
          %v539 = vpop.trf.xlu0
          %v540 = vpop.trf.xlu0
          %v541 = vpack.c.bf16 %v525, %v525
          %s542 = scalar_lea.vmem [#allocation3], 8
          %543 = vst.msk [vmem:[%s542] sm:$0xf] %vm408, %v541
          %544 = vrot.lane.b32.xlu0 %v407, 48
          %v545 = vpop.permute.xlu0 %544
          %s547 = scalar_lea.vmem [#allocation4], 8
          %548 = vst.msk [vmem:[%s547] sm:$0xf] %vm408, %v545
          %549 = vrot.lane.b32.xlu0 %v407, 104
          %v550 = vpop.permute.xlu0 %549
          %s552 = scalar_lea.vmem [#allocation2], 12
          %553 = vst.msk [vmem:[%s552] sm:$0xf] %vm408, %v550
          %554 = vrot.lane.b32.xlu0 %v404, 72
          %v555 = vpop.permute.xlu0 %554
          %557 = vxpose.xlu0.b32.start [1/16] %v555, 128
          %558 = vxpose.xlu0.b32.cont [2/16] 0.0, 128
          %559 = vxpose.xlu0.b32.cont [3/16] 0.0, 128
          %560 = vxpose.xlu0.b32.cont [4/16] 0.0, 128
          %561 = vxpose.xlu0.b32.cont [5/16] 0.0, 128
          %562 = vxpose.xlu0.b32.cont [6/16] 0.0, 128
          %563 = vxpose.xlu0.b32.cont [7/16] 0.0, 128
          %564 = vxpose.xlu0.b32.cont [8/16] 0.0, 128
          %565 = vxpose.xlu0.b32.cont [9/16] 0.0, 128
          %566 = vxpose.xlu0.b32.cont [10/16] 0.0, 128
          %567 = vxpose.xlu0.b32.cont [11/16] 0.0, 128
          %568 = vxpose.xlu0.b32.cont [12/16] 0.0, 128
          %569 = vxpose.xlu0.b32.cont [13/16] 0.0, 128
          %570 = vxpose.xlu0.b32.cont [14/16] 0.0, 128
          %571 = vxpose.xlu0.b32.cont [15/16] 0.0, 128
          %572 = vxpose.xlu0.b32.end [16/16] 0.0, 128
          %v573 = vpop.trf.xlu0
          %v574 = vpop.trf.xlu0
          %v575 = vpop.trf.xlu0
          %v576 = vpop.trf.xlu0
          %v577 = vpop.trf.xlu0
          %v578 = vpop.trf.xlu0
          %v579 = vpop.trf.xlu0
          %v580 = vpop.trf.xlu0
          %v581 = vpop.trf.xlu0
          %v582 = vpop.trf.xlu0
          %v583 = vpop.trf.xlu0
          %v584 = vpop.trf.xlu0
          %v585 = vpop.trf.xlu0
          %v586 = vpop.trf.xlu0
          %v587 = vpop.trf.xlu0
          %v588 = vpop.trf.xlu0
          %v589 = vpack.c.bf16 %v573, %v573
          %s590 = scalar_lea.vmem [#allocation3], 12
          %591 = vst.msk [vmem:[%s590] sm:$0xf] %vm408, %v589
          %592 = vrot.lane.b32.xlu0 %v407, 40
          %v593 = vpop.permute.xlu0 %592
          %s595 = scalar_lea.vmem [#allocation4], 12
          %596 = vst.msk [vmem:[%s595] sm:$0xf] %vm408, %v593
        $region64: #{tpu_custom_call.1} parent=55 // pred_fallthru
          _
        %s597 = smul.u32 %s31, 8
        %s598 = sshra.s32 %s597, 3
        %s599 = sand.u32 %s597, 7
        %s600 = smul.addr %s598, 4
        %s601 = scalar_lea.vmem [#allocation2], %s600
        %v602 = vld [vmem:[%s601] sm:$0xf]
        %v603 = vld [vmem:[%s601 + $0x4] sm:$0xf]
        %v604 = vld [vmem:[%s601 + $0x8] sm:$0xf]
        %v605 = vld [vmem:[%s601 + $0xc] sm:$0xf]
        %v606 = vld [vmem:[#allocation3] sm:$0xf]
        %v607 = vld [vmem:[#allocation3 + $0x4] sm:$0xf]
        %v608 = vld [vmem:[#allocation3 + $0x8] sm:$0xf]
        %v609 = vld [vmem:[#allocation3 + $0xc] sm:$0xf]
        %vm610 = vcmask 64512
        %v612 = vsel %vm610, %v602, 0
        %vm614 = vcmask 1043456
        %v616 = vsel %vm614, %v606, 0
        %618 = vmatpush.bf16.msra.mxu0 0
        %619 = vmatpush.bf16.msra.mxu0 0
        %620 = vmatpush.bf16.msra.mxu0 0
        %621 = vmatpush.bf16.msra.mxu0 0
        %622 = vmatpush.bf16.msra.mxu0 0
        %623 = vmatpush.bf16.msra.mxu0 0
        %624 = vmatpush.bf16.msra.mxu0 0
        %625 = vmatpush.bf16.msra.mxu0 %v616
        %626 = vmatmul.bf16.gmra.mxu0 %v612
        %v627 = vpop.f32.mrf.mxu0
        %v628 = vadd.f32 0.0, %v627
        %v629 = vpop.f32.mrf.mxu0
        %630 = vdwg.mxu0
        %v632 = vsel %vm610, %v603, 0
        %v635 = vsel %vm614, %v607, 0
        %637 = vmatpush.bf16.msra.mxu0 0
        %638 = vmatpush.bf16.msra.mxu0 0
        %639 = vmatpush.bf16.msra.mxu0 0
        %640 = vmatpush.bf16.msra.mxu0 0
        %641 = vmatpush.bf16.msra.mxu0 0
        %642 = vmatpush.bf16.msra.mxu0 0
        %643 = vmatpush.bf16.msra.mxu0 0
        %644 = vmatpush.bf16.msra.mxu0 %v635
        %645 = vmatmul.bf16.gmra.mxu0 %v632
        %v646 = vpop.f32.mrf.mxu0
        %v647 = vadd.f32 0.0, %v646
        %v648 = vpop.f32.mrf.mxu0
        %649 = vdwg.mxu0
        %v651 = vsel %vm610, %v604, 0
        %v654 = vsel %vm614, %v608, 0
        %656 = vmatpush.bf16.msra.mxu0 0
        %657 = vmatpush.bf16.msra.mxu0 0
        %658 = vmatpush.bf16.msra.mxu0 0
        %659 = vmatpush.bf16.msra.mxu0 0
        %660 = vmatpush.bf16.msra.mxu0 0
        %661 = vmatpush.bf16.msra.mxu0 0
        %662 = vmatpush.bf16.msra.mxu0 0
        %663 = vmatpush.bf16.msra.mxu0 %v654
        %664 = vmatmul.bf16.gmra.mxu0 %v651
        %v665 = vpop.f32.mrf.mxu0
        %v666 = vadd.f32 0.0, %v665
        %v667 = vpop.f32.mrf.mxu0
        %668 = vdwg.mxu0
        %v670 = vsel %vm610, %v605, 0
        %v673 = vsel %vm614, %v609, 0
        %675 = vmatpush.bf16.msra.mxu0 0
        %676 = vmatpush.bf16.msra.mxu0 0
        %677 = vmatpush.bf16.msra.mxu0 0
        %678 = vmatpush.bf16.msra.mxu0 0
        %679 = vmatpush.bf16.msra.mxu0 0
        %680 = vmatpush.bf16.msra.mxu0 0
        %681 = vmatpush.bf16.msra.mxu0 0
        %682 = vmatpush.bf16.msra.mxu0 %v673
        %683 = vmatmul.bf16.gmra.mxu0 %v670
        %v684 = vpop.f32.mrf.mxu0
        %v685 = vadd.f32 0.0, %v684
        %v686 = vpop.f32.mrf.mxu0
        %687 = vdwg.mxu0
        %v688 = vsel %vm610, %v628, -inf
        %689 = vmax.xlane.f32.xlu0 %v688
        %v690 = vpop.xlane.xlu0 %689
        %v691 = vsel %vm610, %v647, -inf
        %692 = vmax.xlane.f32.xlu0 %v691
        %v693 = vpop.xlane.xlu0 %692
        %v694 = vsel %vm610, %v666, -inf
        %695 = vmax.xlane.f32.xlu0 %v694
        %v696 = vpop.xlane.xlu0 %695
        %v697 = vsel %vm610, %v685, -inf
        %698 = vmax.xlane.f32.xlu0 %v697
        %v699 = vpop.xlane.xlu0 %698
        %v700 = vsub.f32 %v628, %v690
        %v701 = vsub.f32 %v647, %v693
        %v702 = vsub.f32 %v666, %v696
        %v703 = vsub.f32 %v685, %v699
        %v704 = vmul.f32 %v700, 1.442695
        %v705 = vpow.pop %v704
        %v706 = vmul.f32 %v701, 1.442695
        %v707 = vpow.pop %v706
        %v708 = vmul.f32 %v702, 1.442695
        %v709 = vpow.pop %v708
        %v710 = vmul.f32 %v703, 1.442695
        %v711 = vpow.pop %v710
        %v712 = vsel %vm610, %v705, 0.0
        %713 = vadd.xlane.f32.xlu0 %v712
        %v714 = vpop.xlane.xlu0 %713
        %v715 = vsel %vm610, %v707, 0.0
        %716 = vadd.xlane.f32.xlu0 %v715
        %v717 = vpop.xlane.xlu0 %716
        %v718 = vsel %vm610, %v709, 0.0
        %719 = vadd.xlane.f32.xlu0 %v718
        %v720 = vpop.xlane.xlu0 %719
        %v721 = vsel %vm610, %v711, 0.0
        %722 = vadd.xlane.f32.xlu0 %v721
        %v723 = vpop.xlane.xlu0 %722
        %v724 = vrcp.pop %v714
        %v725 = vrcp.pop %v717
        %v726 = vrcp.pop %v720
        %v727 = vrcp.pop %v723
        %v728 = vmul.f32 %v705, %v724
        %v729 = vmul.f32 %v707, %v725
        %v730 = vmul.f32 %v709, %v726
        %v731 = vmul.f32 %v711, %v727
        %v732 = vpack.c.bf16 %v728, %v728
        %v733 = vpack.c.bf16 %v729, %v729
        %v734 = vpack.c.bf16 %v730, %v730
        %v735 = vpack.c.bf16 %v731, %v731
        %v736 = vld [vmem:[#allocation4] sm:$0xf]
        %v737 = vld [vmem:[#allocation4 + $0x4] sm:$0xf]
        %v738 = vld [vmem:[#allocation4 + $0x8] sm:$0xf]
        %v739 = vld [vmem:[#allocation4 + $0xc] sm:$0xf]
        %v741 = vsel %vm610, %v732, 0
        %v744 = vsel %vm614, %v736, 0
        %746 = vmatpush.bf16.msra.mxu0 0
        %747 = vmatpush.bf16.msra.mxu0 0
        %748 = vmatpush.bf16.msra.mxu0 0
        %749 = vmatpush.bf16.msra.mxu0 0
        %750 = vmatpush.bf16.msra.mxu0 0
        %751 = vmatpush.bf16.msra.mxu0 0
        %752 = vmatpush.bf16.msra.mxu0 0
        %753 = vmatpush.bf16.msra.mxu0 %v744
        %754 = vmatmul.bf16.gmra.mxu0 %v741
        %v755 = vpop.f32.mrf.mxu0
        %v756 = vadd.f32 0.0, %v755
        %v757 = vpop.f32.mrf.mxu0
        %758 = vdwg.mxu0
        %v760 = vsel %vm610, %v733, 0
        %v763 = vsel %vm614, %v737, 0
        %765 = vmatpush.bf16.msra.mxu0 0
        %766 = vmatpush.bf16.msra.mxu0 0
        %767 = vmatpush.bf16.msra.mxu0 0
        %768 = vmatpush.bf16.msra.mxu0 0
        %769 = vmatpush.bf16.msra.mxu0 0
        %770 = vmatpush.bf16.msra.mxu0 0
        %771 = vmatpush.bf16.msra.mxu0 0
        %772 = vmatpush.bf16.msra.mxu0 %v763
        %773 = vmatmul.bf16.gmra.mxu0 %v760
        %v774 = vpop.f32.mrf.mxu0
        %v775 = vadd.f32 0.0, %v774
        %v776 = vpop.f32.mrf.mxu0
        %777 = vdwg.mxu0
        %v779 = vsel %vm610, %v734, 0
        %v782 = vsel %vm614, %v738, 0
        %784 = vmatpush.bf16.msra.mxu0 0
        %785 = vmatpush.bf16.msra.mxu0 0
        %786 = vmatpush.bf16.msra.mxu0 0
        %787 = vmatpush.bf16.msra.mxu0 0
        %788 = vmatpush.bf16.msra.mxu0 0
        %789 = vmatpush.bf16.msra.mxu0 0
        %790 = vmatpush.bf16.msra.mxu0 0
        %791 = vmatpush.bf16.msra.mxu0 %v782
        %792 = vmatmul.bf16.gmra.mxu0 %v779
        %v793 = vpop.f32.mrf.mxu0
        %v794 = vadd.f32 0.0, %v793
        %v795 = vpop.f32.mrf.mxu0
        %796 = vdwg.mxu0
        %v798 = vsel %vm610, %v735, 0
        %v801 = vsel %vm614, %v739, 0
        %803 = vmatpush.bf16.msra.mxu0 0
        %804 = vmatpush.bf16.msra.mxu0 0
        %805 = vmatpush.bf16.msra.mxu0 0
        %806 = vmatpush.bf16.msra.mxu0 0
        %807 = vmatpush.bf16.msra.mxu0 0
        %808 = vmatpush.bf16.msra.mxu0 0
        %809 = vmatpush.bf16.msra.mxu0 0
        %810 = vmatpush.bf16.msra.mxu0 %v801
        %811 = vmatmul.bf16.gmra.mxu0 %v798
        %v812 = vpop.f32.mrf.mxu0
        %v813 = vadd.f32 0.0, %v812
        %v814 = vpop.f32.mrf.mxu0
        %815 = vdwg.mxu0
        %817 = vrot.lane.b32.xlu0 %v775, 8
        %v818 = vpop.permute.xlu0 %817
        %821 = vrot.lane.b32.xlu0 %v794, 16
        %v822 = vpop.permute.xlu0 %821
        %825 = vrot.lane.b32.xlu0 %v813, 24
        %v826 = vpop.permute.xlu0 %825
        %v828 = vsel %vm610, %v756, %v818
        %vm829 = vcmask 130048
        %v830 = vsel %vm829, %v828, %v822
        %vm831 = vcmask 195584
        %v832 = vsel %vm831, %v830, %v826
        %v833 = vpack.c.bf16 %v832, %v832
        %v834 = vld [vmem:[%s3] sm:$0xf]
        %v835 = vld [vmem:[%s3 + $0x4] sm:$0xf]
        %v836 = vld [vmem:[%s3 + $0x8] sm:$0xf]
        %v837 = vld [vmem:[%s3 + $0xc] sm:$0xf]
        %v838 = vld [vmem:[%s4] sm:$0x1]
        %v840 = vperm.slane %v838, 0
        %v846 = vunpack.c.l.b16 %v834
        %v847 = vunpack.c.l.b16 %v835
        %v848 = vunpack.c.l.b16 %v836
        %v849 = vunpack.c.l.b16 %v837
        %v850 = vpack.c.b16 %v847, %v846
        %v851 = vpack.c.b16 %v849, %v848
        %vm854 = vcmask 261120
        %v856 = vsel %vm854, %v833, 0
        %858 = vmatpush.bf16.msra.mxu0 0
        %859 = vmatpush.bf16.msra.mxu0 0
        %860 = vmatpush.bf16.msra.mxu0 0
        %861 = vmatpush.bf16.msra.mxu0 0
        %862 = vmatpush.bf16.msra.mxu0 0
        %863 = vmatpush.bf16.msra.mxu0 0
        %864 = vmatpush.bf16.msra.mxu0 %v851
        %865 = vmatpush.bf16.msra.mxu0 %v850
        %866 = vmatmul.bf16.gmra.mxu0 %v856
        %v867 = vpop.f32.mrf.mxu0
        %v868 = vadd.f32 %v840, %v867
        %v869 = vpop.f32.mrf.mxu0
        %870 = vdwg.mxu0
        %v871 = vpack.c.bf16 %v868, %v868
        %v872 = vld [vmem:[%s5] sm:$0xf]
        %v873 = vld [vmem:[%s5 + $0x4] sm:$0xf]
        %v874 = vld [vmem:[%s5 + $0x8] sm:$0xf]
        %v875 = vld [vmem:[%s5 + $0xc] sm:$0xf]
        %v876 = vld [vmem:[%s6] sm:$0x1]
        %v878 = vperm.slane %v876, 0
        %v884 = vunpack.c.l.b16 %v872
        %v885 = vunpack.c.l.b16 %v873
        %v886 = vunpack.c.l.b16 %v874
        %v887 = vunpack.c.l.b16 %v875
        %v888 = vpack.c.b16 %v885, %v884
        %v889 = vpack.c.b16 %v887, %v886
        %v893 = vsel %vm854, %v871, 0
        %895 = vmatpush.bf16.msra.mxu0 0
        %896 = vmatpush.bf16.msra.mxu0 0
        %897 = vmatpush.bf16.msra.mxu0 0
        %898 = vmatpush.bf16.msra.mxu0 0
        %899 = vmatpush.bf16.msra.mxu0 0
        %900 = vmatpush.bf16.msra.mxu0 0
        %901 = vmatpush.bf16.msra.mxu0 %v889
        %902 = vmatpush.bf16.msra.mxu0 %v888
        %903 = vmatmul.bf16.gmra.mxu0 %v893
        %v904 = vpop.f32.mrf.mxu0
        %v905 = vadd.f32 %v878, %v904
        %v906 = vpop.f32.mrf.mxu0
        %907 = vdwg.mxu0
        %v908 = vmul.f32 %v905, 0.5
        %v909 = vmul.f32 %v905, 0.70710677
        %v910 = vmul.f32 %v909, %v909
        %v911 = vmin.f32 16.0, %v910
        %v912 = vmul.f32 %v911, 2.1237322e-06
        %v913 = vadd.f32 %v912, 0.00028619796
        %v914 = vmul.f32 %v911, %v913
        %v915 = vadd.f32 %v914, 0.0036580483
        %v916 = vmul.f32 %v911, %v915
        %v917 = vadd.f32 %v916, 0.05243302
        %v918 = vmul.f32 %v911, %v917
        %v919 = vadd.f32 %v918, 0.18741608
        %v920 = vmul.f32 %v911, %v919
        %v921 = vadd.f32 %v920, 1.1283791
        %v922 = vmul.f32 %v909, %v921
        %v923 = vmul.f32 %v911, 3.8918573e-05
        %v924 = vadd.f32 %v923, 0.001143296
        %v925 = vmul.f32 %v911, %v924
        %v926 = vadd.f32 %v925, 0.014752088
        %v927 = vmul.f32 %v911, %v926
        %v928 = vadd.f32 %v927, 0.112945676
        %v929 = vmul.f32 %v911, %v928
        %v930 = vadd.f32 %v929, 0.4994258
        %v931 = vmul.f32 %v911, %v930
        %v932 = vadd.f32 %v931, 1.0
        %v933 = vrcp.pop %v932
        %v934 = vmul.f32 %v932, %v933
        %v935 = vsub.f32 1.0, %v934
        %v936 = vmul.f32 %v933, %v935
        %v937 = vadd.f32 %v933, %v936
        %vm938 = vweird.f32 %v932
        %vm939 = vweird.f32 %v933
        %vm940 = vmor %vm938, %vm939
        %v941 = vsel %vm940, %v933, %v937
        %v942 = vand.u32 2147483647, %v932
        %vm943 = vcmp.eq.f32.partialorder %v942, 8.507059e+37
        %v944 = vand.u32 %v932, 2147483648
        %v945 = vor.u32 1.1754944e-38, %v944
        %v946 = vsel %vm943, %v945, %v941
        %v947 = vmul.f32 %v922, %v946
        %v948 = vmin.f32 %v947, 1.0
        %v949 = vmax.f32 %v948, -1.0
        %v950 = vadd.f32 %v949, 1.0
        %v951 = vmul.f32 %v908, %v950
        %v952 = vpack.c.bf16 %v951, %v951
        %v953 = vld [vmem:[%s7] sm:$0xf]
        %v954 = vld [vmem:[%s7 + $0x4] sm:$0xf]
        %v955 = vld [vmem:[%s7 + $0x8] sm:$0xf]
        %v956 = vld [vmem:[%s7 + $0xc] sm:$0xf]
        %v957 = vld [vmem:[%s7 + $0x10] sm:$0xf]
        %v958 = vld [vmem:[%s7 + $0x14] sm:$0xf]
        %v959 = vld [vmem:[%s7 + $0x18] sm:$0xf]
        %v960 = vld [vmem:[%s7 + $0x1c] sm:$0xf]
        %v961 = vld [vmem:[%s8] sm:$0x1]
        %v963 = vperm.slane %v961, 0
        %v973 = vunpack.c.l.b16 %v953
        %v974 = vunpack.c.l.b16 %v954
        %v975 = vunpack.c.l.b16 %v955
        %v976 = vunpack.c.l.b16 %v956
        %v977 = vunpack.c.l.b16 %v957
        %v978 = vunpack.c.l.b16 %v958
        %v979 = vunpack.c.l.b16 %v959
        %v980 = vunpack.c.l.b16 %v960
        %v981 = vpack.c.b16 %v974, %v973
        %v982 = vpack.c.b16 %v976, %v975
        %v983 = vpack.c.b16 %v978, %v977
        %v984 = vpack.c.b16 %v980, %v979
        %vm989 = vcmask 523264
        %v991 = vsel %vm989, %v952, 0
        %993 = vmatpush.bf16.msra.mxu0 0
        %994 = vmatpush.bf16.msra.mxu0 0
        %995 = vmatpush.bf16.msra.mxu0 0
        %996 = vmatpush.bf16.msra.mxu0 0
        %997 = vmatpush.bf16.msra.mxu0 %v984
        %998 = vmatpush.bf16.msra.mxu0 %v983
        %999 = vmatpush.bf16.msra.mxu0 %v982
        %1000 = vmatpush.bf16.msra.mxu0 %v981
        %1001 = vmatmul.bf16.gmra.mxu0 %v991
        %v1002 = vpop.f32.mrf.mxu0
        %v1003 = vadd.f32 %v963, %v1002
        %v1004 = vpop.f32.mrf.mxu0
        %1005 = vdwg.mxu0
        %1006 = vst.msk [vmem:[%s363] sm:$0xff] %vm854, %v1003
        %s1007 = sand.u32 %s242, 1
        %s1008 = scalar_lea.sflag [#allocation7], %s1007
        %s1009 = sand.u32 %s242, 1
        %s1010 = smul.addr %s1009, 8
        %s1011 = scalar_lea.vmem [#allocation8], %s1010
        // Predicated region
        $region65: #{tpu_custom_call.1} parent=55 // pred_check
          %p1012 = pneg %p252
        $region66: #{tpu_custom_call.1} parent=55 // pred_check_branch
          %1014 = sbr.rel (%p1012) target = $region68
        $region67: #{tpu_custom_call.1} parent=55 // pred_region
          %1016 = vsyncadd %s1008, 0
          %s1017 = sadd.s32 %s31, %s30
          %s1018 = smul.addr %s1017, 8
          %s1019 = scalar_lea.hbm %s9, %s1018
          %s1021 = sshll.u32 %s1011, 4
          %s1022 = int_to_ptr.vmem [resolvable:$true] %s1021
          %s1023 = sshll.u32 %s1019, 4
          %s1024 = int_to_ptr.hbm [resolvable:$true] %s1023
          %1026 = dma.vmem_to_hbm [thread:$0]  %s1022, 128, %s1024, %s1008
        $region68: #{tpu_custom_call.1} parent=55 // pred_fallthru
          _
      $region56: #{tpu_custom_call.1} parent=5 // pred_fallthru
        _
      %p1027 = scmp.le.s32.totalorder 2, %s21
      // Predicated region
      $region69: #{tpu_custom_call.1} parent=5 // pred_check
        %p1028 = pneg %p1027
      $region70: #{tpu_custom_call.1} parent=5 // pred_check_branch
        %1030 = sbr.rel (%p1028) target = $region72
      $region71: #{tpu_custom_call.1} parent=5 // pred_region
        %s1031 = ssub.s32 %s21, 2
        // Predicated region
        $region73: #{tpu_custom_call.1} parent=71 // pred_check
          %p1032 = pneg %p258
        $region74: #{tpu_custom_call.1} parent=71 // pred_check_branch
          %1034 = sbr.rel (%p1032) target = $region76
        $region75: #{tpu_custom_call.1} parent=71 // pred_region
          %s1035 = sand.u32 %s243, 1
          %s1036 = scalar_lea.sflag [#allocation7], %s1035
          %s1037 = sand.u32 %s243, 1
          %s1038 = smul.addr %s1037, 8
          %s1039 = scalar_lea.vmem [#allocation8], %s1038
          %1041 = dma.done %s1036, 128
        $region76: #{tpu_custom_call.1} parent=71 // pred_fallthru
          _
      $region72: #{tpu_custom_call.1} parent=5 // pred_fallthru
        _
    $region6: #{tpu_custom_call.1} parent=1 // loop_footer
      %s25 = sadd.s32 1, %s21
    $region7: #{tpu_custom_call.1} parent=1 // loop_footer_branch
      %20 = sbr.rel target = $region3
    $region8: #{tpu_custom_call.1} parent=1 // loop_exit
      _
    %1042 = vsyncpa [#allocation6], 1
    %s1043 = scalar_lea.sflag [#allocation6], 1
    %1044 = vsyncpa %s1043, 1
    %1045 = vsyncpa [#allocation7], 1
    %s1046 = scalar_lea.sflag [#allocation7], 1
    %1047 = vsyncpa %s1046, 1

</llo_original>
